<compile_context>
chip_gen: v6e
topology: v6e:2x2x1
jax: 0.10.0
libtpu: 0.0.40
codegen_flags: <defaults>
</compile_context>

<pallas_src>
import functools

import jax
import jax.numpy as jnp
from jax import lax
from jax.experimental import pallas as pl
from jax.experimental.pallas import tpu as pltpu


# ----------------------------------------------------------------------------
# Kernel
# ----------------------------------------------------------------------------
def _bilstm_fc_softmax_kernel(
    x_ref,        # (T*TB, D)    compute dtype, time-major rows [t*TB + j]
    wih_f_ref,    # (D, 4*Hp)    forward  W_ih^T, gate-padded, compute dtype
    whh_f_ref,    # (Hp, 4*Hp)   forward  W_hh^T, gate/row-padded, compute dtype
    b_f_ref,      # (1, 4*Hp)    forward  b_ih + b_hh, gate-padded, f32
    wih_b_ref,    # (D, 4*Hp)    backward W_ih^T, gate-padded, compute dtype
    b_b_ref,      # (1, 4*Hp)    backward b_ih + b_hh, gate-padded, f32
    wfc_f_ref,    # (Hp, Op)     fc1 weight^T rows for forward h, compute dtype
    wfc_b_ref,    # (Hp, Op)     fc1 weight^T rows for backward h, compute dtype
    bfc_ref,      # (1, Op)      fc1 bias, padded lanes = -1e30, f32
    out_ref,      # (TB, Op)     softmax probabilities, f32
    xg_ref,       # (T*TB, 4*Hp) f32 VMEM scratch: hoisted input projection
    *, T, TB,
):
    Hp = whh_f_ref.shape[0]          # padded hidden size (multiple of 128)
    cd = whh_f_ref.dtype             # matmul operand dtype (bf16 or f32)

    # ---- hoisted input projection: one big MXU matmul, off the serial path ----
    xg_ref[...] = (
        jnp.dot(x_ref[...], wih_f_ref[...], preferred_element_type=jnp.float32)
        + b_f_ref[...]
    )

    # ---- forward recurrence (fully unrolled; only h @ W_hh per step) ----
    h = jnp.zeros((TB, Hp), jnp.float32)
    c = jnp.zeros((TB, Hp), jnp.float32)
    for t in range(T):                                   # static -> unrolled
        gates = xg_ref[t * TB:(t + 1) * TB, :] + jnp.dot(
            h.astype(cd), whh_f_ref[...], preferred_element_type=jnp.float32)
        # lane-aligned 128-wide gate views (PyTorch order [i, f, g, o])
        i = jax.nn.sigmoid(gates[:, 0 * Hp:1 * Hp])
        f = jax.nn.sigmoid(gates[:, 1 * Hp:2 * Hp])
        g = jnp.tanh(gates[:, 2 * Hp:3 * Hp])
        o = jax.nn.sigmoid(gates[:, 3 * Hp:4 * Hp])
        c = f * c + i * g
        h = o * jnp.tanh(c)
    h_fwd = h

    # ---- backward direction: single exact step (zero init state, so the
    #      h @ W_hh and f*c terms vanish) ----
    x_last = x_ref[(T - 1) * TB: T * TB, :]
    gb = (jnp.dot(x_last, wih_b_ref[...], preferred_element_type=jnp.float32)
          + b_b_ref[...])
    i_b = jax.nn.sigmoid(gb[:, 0 * Hp:1 * Hp])
    g_b = jnp.tanh(gb[:, 2 * Hp:3 * Hp])
    o_b = jax.nn.sigmoid(gb[:, 3 * Hp:4 * Hp])
    h_bwd = o_b * jnp.tanh(i_b * g_b)

    # ---- fc1 (no concat: two dots into the same f32 accumulator) + softmax ----
    logits = (
        jnp.dot(h_fwd.astype(cd), wfc_f_ref[...], preferred_element_type=jnp.float32)
        + jnp.dot(h_bwd.astype(cd), wfc_b_ref[...], preferred_element_type=jnp.float32)
        + bfc_ref[...]                                   # padded lanes -> -1e30
    )
    m = jnp.max(logits, axis=1, keepdims=True)
    e = jnp.exp(logits - m)
    s = jnp.sum(e, axis=1, keepdims=True)
    inv = pl.reciprocal(s, approx=True)                  # EUP slot
    inv = inv * (2.0 - s * inv)                          # Newton refinement
    inv = inv * (2.0 - s * inv)                          # -> f32-level accuracy
    out_ref[...] = e * inv


# ----------------------------------------------------------------------------
# Parameter packing (gate/lane padding, dtype cast)
# ----------------------------------------------------------------------------
def _round_up(n, m):
    return ((n + m - 1) // m) * m


def _pad_gate_cols(w, H, Hp):
    """(rows, 4H) -> (rows, 4Hp); gate k occupies lanes [k*Hp, k*Hp+H)."""
    rows = w.shape[0]
    out = jnp.zeros((rows, 4 * Hp), w.dtype)
    for k in range(4):
        out = out.at[:, k * Hp: k * Hp + H].set(w[:, k * H:(k + 1) * H])
    return out


def pack_params(params, matmul_dtype):
    H = params["whh_f"].shape[0]
    O = params["wfc"].shape[1]
    Hp = _round_up(H, 128)
    Op = _round_up(O, 128)
    cd = matmul_dtype

    wih_f = _pad_gate_cols(params["wih_f"], H, Hp).astype(cd)
    wih_b = _pad_gate_cols(params["wih_b"], H, Hp).astype(cd)
    whh_f = (jnp.zeros((Hp, 4 * Hp), jnp.float32)
             .at[:H, :].set(_pad_gate_cols(params["whh_f"], H, Hp))).astype(cd)
    b_f = _pad_gate_cols(params["b_f"], H, Hp)            # stays f32
    b_b = _pad_gate_cols(params["b_b"], H, Hp)            # stays f32
    wfc = params["wfc"]                                   # (2H, O)
    wfc_f = (jnp.zeros((Hp, Op), jnp.float32).at[:H, :O].set(wfc[:H])).astype(cd)
    wfc_b = (jnp.zeros((Hp, Op), jnp.float32).at[:H, :O].set(wfc[H:])).astype(cd)
    bfc = jnp.full((1, Op), -1e30, jnp.float32).at[:, :O].set(params["bfc"])
    return dict(wih_f=wih_f, whh_f=whh_f, b_f=b_f, wih_b=wih_b, b_b=b_b,
                wfc_f=wfc_f, wfc_b=wfc_b, bfc=bfc, H=H, Hp=Hp, O=O, Op=Op)


def _default_matmul_dtype():
    """bf16 matmul operands on v6e/v7x (free ~2x); f32 on v5e (no bf16 VPU/EUP)."""
    try:
        kind = jax.devices()[0].device_kind.lower()
    except Exception:
        return jnp.float32
    if "v5 lite" in kind or "v5e" in kind or "v5lite" in kind:
        return jnp.float32
    return jnp.bfloat16


def _full_spec(shape):
    return pl.BlockSpec(shape, lambda b: (0, 0))


# ----------------------------------------------------------------------------
# Wrapper
# ----------------------------------------------------------------------------
def bilstm_model_forward(x_btd, params, *, matmul_dtype=None):
    """x_btd: (B, T, D) float32 batch-first input (post x.view(B, -1, D))."""
    if matmul_dtype is None:
        matmul_dtype = _default_matmul_dtype()
    B, T, D = x_btd.shape
    p = pack_params(params, matmul_dtype)
    Hp, O, Op = p["Hp"], p["O"], p["Op"]

    # Batch tiling: grid over batch tiles (parallel -> uses v7x's 2nd TC when
    # B is large); weights stay resident, x is pipelined per tile.
    TB = 8 if B >= 8 else B
    B_pad = _round_up(B, TB)
    NB = B_pad // TB

    # Relayout x: (B, T, D) -> (NB, T*TB, D), time-major inside each batch tile
    # (cheap wrapper-side relayout; kernel then sees a 2-D lane-dense slab).
    xt = jnp.transpose(x_btd.astype(matmul_dtype), (1, 0, 2))        # (T, B, D)
    if B_pad != B:
        xt = jnp.pad(xt, ((0, 0), (0, B_pad - B), (0, 0)))
    xt = xt.reshape(T, NB, TB, D).transpose(1, 0, 2, 3).reshape(NB, T * TB, D)

    kernel = functools.partial(_bilstm_fc_softmax_kernel, T=T, TB=TB)

    grid_spec = pltpu.PrefetchScalarGridSpec(
        num_scalar_prefetch=0,
        grid=(NB,),
        in_specs=[
            pl.BlockSpec((None, T * TB, D), lambda b: (b, 0, 0)),    # x tile
            _full_spec(p["wih_f"].shape),
            _full_spec(p["whh_f"].shape),
            _full_spec(p["b_f"].shape),
            _full_spec(p["wih_b"].shape),
            _full_spec(p["b_b"].shape),
            _full_spec(p["wfc_f"].shape),
            _full_spec(p["wfc_b"].shape),
            _full_spec(p["bfc"].shape),
        ],
        out_specs=pl.BlockSpec((TB, Op), lambda b: (b, 0)),
        scratch_shapes=[pltpu.VMEM((T * TB, 4 * Hp), jnp.float32)],
    )

    out_padded = pl.pallas_call(
        kernel,
        out_shape=jax.ShapeDtypeStruct((B_pad, Op), jnp.float32),
        grid_spec=grid_spec,
        compiler_params=pltpu.CompilerParams(
            dimension_semantics=("parallel",),
            # modest explicit limit with headroom; safe for v7x's 64 MiB VMEM
            vmem_limit_bytes=32 * 1024 * 1024,
        ),
    )(xt, p["wih_f"], p["whh_f"], p["b_f"], p["wih_b"], p["b_b"],
      p["wfc_f"], p["wfc_b"], p["bfc"])

    return out_padded[:B, :O]


# ----------------------------------------------------------------------------
# Params + pure-JAX reference
# ----------------------------------------------------------------------------
def make_params(key, input_size, hidden_size, output_size):
    """Deterministic synthetic weights (PyTorch-style uniform(-1/sqrt(H), 1/sqrt(H)))."""
    H, D, O = hidden_size, input_size, output_size
    ks = jax.random.split(key, 10)
    bound = 1.0 / jnp.sqrt(jnp.float32(H))

    def u(k, shape):
        return jax.random.uniform(k, shape, jnp.float32, -bound, bound)

    # stored pre-transposed: (in, 4H), PyTorch gate order [i, f, g, o]
    wih_f = u(ks[0], (D, 4 * H))
    whh_f = u(ks[1], (H, 4 * H))
    b_f = u(ks[2], (1, 4 * H)) + u(ks[3], (1, 4 * H))     # b_ih + b_hh
    wih_b = u(ks[4], (D, 4 * H))
    whh_b = u(ks[5], (H, 4 * H))                          # unused (zero init state)
    b_b = u(ks[6], (1, 4 * H)) + u(ks[7], (1, 4 * H))
    wfc = u(ks[8], (2 * H, O))
    bfc = u(ks[9], (1, O))
    return dict(wih_f=wih_f, whh_f=whh_f, b_f=b_f,
                wih_b=wih_b, whh_b=whh_b, b_b=b_b,
                wfc=wfc, bfc=bfc)


def _reference_forward(x_btd, params, matmul_dtype):
    """Pure-JAX reference with the same matmul operand dtype policy."""
    B, T, D = x_btd.shape
    H = params["whh_f"].shape[0]
    cd = matmul_dtype

    def dot(a, b):
        return jnp.dot(a.astype(cd), b.astype(cd),
                       preferred_element_type=jnp.float32)

    def cell(xt, h, c, w_ih, w_hh, b):
        g = dot(xt, w_ih) + dot(h, w_hh) + b
        i = jax.nn.sigmoid(g[:, :H])
        f = jax.nn.sigmoid(g[:, H:2 * H])
        gg = jnp.tanh(g[:, 2 * H:3 * H])
        o = jax.nn.sigmoid(g[:, 3 * H:])
        c = f * c + i * gg
        return o * jnp.tanh(c), c

    h = jnp.zeros((B, H), jnp.float32)
    c = jnp.zeros((B, H), jnp.float32)
    for t in range(T):
        h, c = cell(x_btd[:, t], h, c,
                    params["wih_f"], params["whh_f"], params["b_f"])
    hb, _ = cell(x_btd[:, T - 1], jnp.zeros((B, H), jnp.float32),
                 jnp.zeros((B, H), jnp.float32),
                 params["wih_b"], params["whh_b"], params["b_b"])
    hh = jnp.concatenate([h, hb], axis=1)
    logits = dot(hh, params["wfc"]) + params["bfc"]
    return jax.nn.softmax(logits, axis=1)


# ----------------------------------------------------------------------------
if __name__ == "__main__":
    B, T = 2, 8
    input_size, hidden_size, output_size = 4, 32, 8

    key = jax.random.PRNGKey(0)
    kx, kp = jax.random.split(key)
    # PyTorch forward does x.view(B, -1, input_size); we supply x already in
    # (B, T, input_size) so the view is the identity.
    x = jax.random.normal(kx, (B, T, input_size), jnp.float32)
    params = make_params(kp, input_size, hidden_size, output_size)

    matmul_dtype = _default_matmul_dtype()

    fwd = jax.jit(functools.partial(bilstm_model_forward,
                                    matmul_dtype=matmul_dtype))
    out = jax.block_until_ready(fwd(x, params))

    ref = _reference_forward(x, params, matmul_dtype)
    assert out.shape == (B, output_size)
    max_err = jnp.max(jnp.abs(out - ref))
    assert jnp.allclose(out, ref, rtol=5e-4, atol=5e-4), f"mismatch vs reference: {max_err}"
    assert jnp.allclose(jnp.sum(out, axis=1), 1.0, atol=5e-4)

    print("KERNEL_OK")
</pallas_src>

<mosaic_0001>
module attributes {stable_mosaic.version = 11 : i64} {
  func.func @_bilstm_fc_softmax_kernel(%arg0: i32, %arg1: memref<1x16x4xbf16, #tpu.memory_space<vmem>>, %arg2: memref<4x512xbf16, #tpu.memory_space<vmem>>, %arg3: memref<128x512xbf16, #tpu.memory_space<vmem>>, %arg4: memref<1x512xf32, #tpu.memory_space<vmem>>, %arg5: memref<4x512xbf16, #tpu.memory_space<vmem>>, %arg6: memref<1x512xf32, #tpu.memory_space<vmem>>, %arg7: memref<128x128xbf16, #tpu.memory_space<vmem>>, %arg8: memref<128x128xbf16, #tpu.memory_space<vmem>>, %arg9: memref<1x128xf32, #tpu.memory_space<vmem>>, %arg10: memref<2x128xf32, #tpu.memory_space<vmem>>, %arg11: memref<16x512xf32, #tpu.memory_space<vmem>>) attributes {dimension_semantics = [#tpu.dimension_semantics<parallel>], iteration_bounds = array<i64: 1>, scalar_prefetch = 0 : i64, scratch_operands = 1 : i64, tpu.core_type = #tpu.core_type<tc>, window_params = [{transform_indices = @transform_0, window_bounds = array<i64: 1, 16, 4>}, {pipeline_mode = #tpu.pipeline_mode<synchronous>, transform_indices = @transform_1, window_bounds = array<i64: 4, 512>}, {pipeline_mode = #tpu.pipeline_mode<synchronous>, transform_indices = @transform_2, window_bounds = array<i64: 128, 512>}, {pipeline_mode = #tpu.pipeline_mode<synchronous>, transform_indices = @transform_3, window_bounds = array<i64: 1, 512>}, {pipeline_mode = #tpu.pipeline_mode<synchronous>, transform_indices = @transform_4, window_bounds = array<i64: 4, 512>}, {pipeline_mode = #tpu.pipeline_mode<synchronous>, transform_indices = @transform_5, window_bounds = array<i64: 1, 512>}, {pipeline_mode = #tpu.pipeline_mode<synchronous>, transform_indices = @transform_6, window_bounds = array<i64: 128, 128>}, {pipeline_mode = #tpu.pipeline_mode<synchronous>, transform_indices = @transform_7, window_bounds = array<i64: 128, 128>}, {pipeline_mode = #tpu.pipeline_mode<synchronous>, transform_indices = @transform_8, window_bounds = array<i64: 1, 128>}, {transform_indices = @transform_9, window_bounds = array<i64: 2, 128>}]} {
    %c0 = arith.constant 0 : index
    %c0_0 = arith.constant 0 : index
    %c0_1 = arith.constant 0 : index
    %0 = vector.load %arg1[%c0, %c0_0, %c0_1] : memref<1x16x4xbf16, #tpu.memory_space<vmem>>, vector<1x16x4xbf16>
    %1 = vector.shape_cast %0 : vector<1x16x4xbf16> to vector<16x4xbf16>
    %c0_2 = arith.constant 0 : index
    %c0_3 = arith.constant 0 : index
    %2 = vector.load %arg2[%c0_2, %c0_3] : memref<4x512xbf16, #tpu.memory_space<vmem>>, vector<4x512xbf16>
    %cst = arith.constant dense<0.000000e+00> : vector<16x512xf32>
    %3 = tpu.matmul %1, %2, %cst {dimension_numbers = #tpu.dot_dimension_numbers<[1], [0], [0], [1], [0, 0, 1, 1], [], []>} : vector<16x4xbf16>, vector<4x512xbf16>, vector<16x512xf32> -> vector<16x512xf32>
    %c0_4 = arith.constant 0 : index
    %c0_5 = arith.constant 0 : index
    %4 = vector.load %arg4[%c0_4, %c0_5] : memref<1x512xf32, #tpu.memory_space<vmem>>, vector<1x512xf32>
    %5 = vector.broadcast %4 : vector<1x512xf32> to vector<16x512xf32>
    %6 = arith.addf %3, %5 : vector<16x512xf32>
    %c0_6 = arith.constant 0 : index
    %c0_7 = arith.constant 0 : index
    %7 = vector.load %arg11[%c0_6, %c0_7] : memref<16x512xf32, #tpu.memory_space<vmem>>, vector<16x512xf32>
    tpu.vector_store %arg11[%c0_6, %c0_7], %6 {strides = array<i32>} : memref<16x512xf32, #tpu.memory_space<vmem>>, vector<16x512xf32>,
    %cst_8 = arith.constant 0.000000e+00 : f32
    %8 = vector.broadcast %cst_8 : f32 to vector<2x128xf32>
    %cst_9 = arith.constant 0.000000e+00 : f32
    %9 = vector.broadcast %cst_9 : f32 to vector<2x128xf32>
    %c0_10 = arith.constant 0 : index
    %c0_11 = arith.constant 0 : index
    %10 = vector.load %arg11[%c0_10, %c0_11] : memref<16x512xf32, #tpu.memory_space<vmem>>, vector<2x512xf32>
    %11 = arith.truncf %8 : vector<2x128xf32> to vector<2x128xbf16>
    %c0_12 = arith.constant 0 : index
    %c0_13 = arith.constant 0 : index
    %12 = vector.load %arg3[%c0_12, %c0_13] : memref<128x512xbf16, #tpu.memory_space<vmem>>, vector<128x512xbf16>
    %cst_14 = arith.constant dense<0.000000e+00> : vector<2x512xf32>
    %13 = tpu.matmul %11, %12, %cst_14 {dimension_numbers = #tpu.dot_dimension_numbers<[1], [0], [0], [1], [0, 0, 1, 1], [], []>} : vector<2x128xbf16>, vector<128x512xbf16>, vector<2x512xf32> -> vector<2x512xf32>
    %14 = arith.addf %10, %13 : vector<2x512xf32>
    %15 = vector.extract_strided_slice %14 {offsets = [0, 0], sizes = [2, 128], strides = [1, 1]} : vector<2x512xf32> to vector<2x128xf32>
    %16 = arith.negf %15 : vector<2x128xf32>
    %17 = math.exp %16 : vector<2x128xf32>
    %cst_15 = arith.constant 1.000000e+00 : f32
    %18 = vector.broadcast %cst_15 : f32 to vector<2x128xf32>
    %19 = arith.addf %18, %17 : vector<2x128xf32>
    %20 = arith.divf %18, %19 : vector<2x128xf32>
    %21 = vector.extract_strided_slice %14 {offsets = [0, 128], sizes = [2, 128], strides = [1, 1]} : vector<2x512xf32> to vector<2x128xf32>
    %22 = arith.negf %21 : vector<2x128xf32>
    %23 = math.exp %22 : vector<2x128xf32>
    %cst_16 = arith.constant 1.000000e+00 : f32
    %24 = vector.broadcast %cst_16 : f32 to vector<2x128xf32>
    %25 = arith.addf %24, %23 : vector<2x128xf32>
    %26 = arith.divf %24, %25 : vector<2x128xf32>
    %27 = vector.extract_strided_slice %14 {offsets = [0, 256], sizes = [2, 128], strides = [1, 1]} : vector<2x512xf32> to vector<2x128xf32>
    %28 = math.tanh %27 : vector<2x128xf32>
    %29 = vector.extract_strided_slice %14 {offsets = [0, 384], sizes = [2, 128], strides = [1, 1]} : vector<2x512xf32> to vector<2x128xf32>
    %30 = arith.negf %29 : vector<2x128xf32>
    %31 = math.exp %30 : vector<2x128xf32>
    %cst_17 = arith.constant 1.000000e+00 : f32
    %32 = vector.broadcast %cst_17 : f32 to vector<2x128xf32>
    %33 = arith.addf %32, %31 : vector<2x128xf32>
    %34 = arith.divf %32, %33 : vector<2x128xf32>
    %35 = arith.mulf %26, %9 : vector<2x128xf32>
    %36 = arith.mulf %20, %28 : vector<2x128xf32>
    %37 = arith.addf %35, %36 : vector<2x128xf32>
    %38 = math.tanh %37 : vector<2x128xf32>
    %39 = arith.mulf %34, %38 : vector<2x128xf32>
    %c2 = arith.constant 2 : index
    %c0_18 = arith.constant 0 : index
    %40 = vector.load %arg11[%c2, %c0_18] : memref<16x512xf32, #tpu.memory_space<vmem>>, vector<2x512xf32>
    %41 = arith.truncf %39 : vector<2x128xf32> to vector<2x128xbf16>
    %c0_19 = arith.constant 0 : index
    %c0_20 = arith.constant 0 : index
    %42 = vector.load %arg3[%c0_19, %c0_20] : memref<128x512xbf16, #tpu.memory_space<vmem>>, vector<128x512xbf16>
    %cst_21 = arith.constant dense<0.000000e+00> : vector<2x512xf32>
    %43 = tpu.matmul %41, %42, %cst_21 {dimension_numbers = #tpu.dot_dimension_numbers<[1], [0], [0], [1], [0, 0, 1, 1], [], []>} : vector<2x128xbf16>, vector<128x512xbf16>, vector<2x512xf32> -> vector<2x512xf32>
    %44 = arith.addf %40, %43 : vector<2x512xf32>
    %45 = vector.extract_strided_slice %44 {offsets = [0, 0], sizes = [2, 128], strides = [1, 1]} : vector<2x512xf32> to vector<2x128xf32>
    %46 = arith.negf %45 : vector<2x128xf32>
    %47 = math.exp %46 : vector<2x128xf32>
    %cst_22 = arith.constant 1.000000e+00 : f32
    %48 = vector.broadcast %cst_22 : f32 to vector<2x128xf32>
    %49 = arith.addf %48, %47 : vector<2x128xf32>
    %50 = arith.divf %48, %49 : vector<2x128xf32>
    %51 = vector.extract_strided_slice %44 {offsets = [0, 128], sizes = [2, 128], strides = [1, 1]} : vector<2x512xf32> to vector<2x128xf32>
    %52 = arith.negf %51 : vector<2x128xf32>
    %53 = math.exp %52 : vector<2x128xf32>
    %cst_23 = arith.constant 1.000000e+00 : f32
    %54 = vector.broadcast %cst_23 : f32 to vector<2x128xf32>
    %55 = arith.addf %54, %53 : vector<2x128xf32>
    %56 = arith.divf %54, %55 : vector<2x128xf32>
    %57 = vector.extract_strided_slice %44 {offsets = [0, 256], sizes = [2, 128], strides = [1, 1]} : vector<2x512xf32> to vector<2x128xf32>
    %58 = math.tanh %57 : vector<2x128xf32>
    %59 = vector.extract_strided_slice %44 {offsets = [0, 384], sizes = [2, 128], strides = [1, 1]} : vector<2x512xf32> to vector<2x128xf32>
    %60 = arith.negf %59 : vector<2x128xf32>
    %61 = math.exp %60 : vector<2x128xf32>
    %cst_24 = arith.constant 1.000000e+00 : f32
    %62 = vector.broadcast %cst_24 : f32 to vector<2x128xf32>
    %63 = arith.addf %62, %61 : vector<2x128xf32>
    %64 = arith.divf %62, %63 : vector<2x128xf32>
    %65 = arith.mulf %56, %37 : vector<2x128xf32>
    %66 = arith.mulf %50, %58 : vector<2x128xf32>
    %67 = arith.addf %65, %66 : vector<2x128xf32>
    %68 = math.tanh %67 : vector<2x128xf32>
    %69 = arith.mulf %64, %68 : vector<2x128xf32>
    %c4 = arith.constant 4 : index
    %c0_25 = arith.constant 0 : index
    %70 = vector.load %arg11[%c4, %c0_25] : memref<16x512xf32, #tpu.memory_space<vmem>>, vector<2x512xf32>
    %71 = arith.truncf %69 : vector<2x128xf32> to vector<2x128xbf16>
    %c0_26 = arith.constant 0 : index
    %c0_27 = arith.constant 0 : index
    %72 = vector.load %arg3[%c0_26, %c0_27] : memref<128x512xbf16, #tpu.memory_space<vmem>>, vector<128x512xbf16>
    %cst_28 = arith.constant dense<0.000000e+00> : vector<2x512xf32>
    %73 = tpu.matmul %71, %72, %cst_28 {dimension_numbers = #tpu.dot_dimension_numbers<[1], [0], [0], [1], [0, 0, 1, 1], [], []>} : vector<2x128xbf16>, vector<128x512xbf16>, vector<2x512xf32> -> vector<2x512xf32>
    %74 = arith.addf %70, %73 : vector<2x512xf32>
    %75 = vector.extract_strided_slice %74 {offsets = [0, 0], sizes = [2, 128], strides = [1, 1]} : vector<2x512xf32> to vector<2x128xf32>
    %76 = arith.negf %75 : vector<2x128xf32>
    %77 = math.exp %76 : vector<2x128xf32>
    %cst_29 = arith.constant 1.000000e+00 : f32
    %78 = vector.broadcast %cst_29 : f32 to vector<2x128xf32>
    %79 = arith.addf %78, %77 : vector<2x128xf32>
    %80 = arith.divf %78, %79 : vector<2x128xf32>
    %81 = vector.extract_strided_slice %74 {offsets = [0, 128], sizes = [2, 128], strides = [1, 1]} : vector<2x512xf32> to vector<2x128xf32>
    %82 = arith.negf %81 : vector<2x128xf32>
    %83 = math.exp %82 : vector<2x128xf32>
    %cst_30 = arith.constant 1.000000e+00 : f32
    %84 = vector.broadcast %cst_30 : f32 to vector<2x128xf32>
    %85 = arith.addf %84, %83 : vector<2x128xf32>
    %86 = arith.divf %84, %85 : vector<2x128xf32>
    %87 = vector.extract_strided_slice %74 {offsets = [0, 256], sizes = [2, 128], strides = [1, 1]} : vector<2x512xf32> to vector<2x128xf32>
    %88 = math.tanh %87 : vector<2x128xf32>
    %89 = vector.extract_strided_slice %74 {offsets = [0, 384], sizes = [2, 128], strides = [1, 1]} : vector<2x512xf32> to vector<2x128xf32>
    %90 = arith.negf %89 : vector<2x128xf32>
    %91 = math.exp %90 : vector<2x128xf32>
    %cst_31 = arith.constant 1.000000e+00 : f32
    %92 = vector.broadcast %cst_31 : f32 to vector<2x128xf32>
    %93 = arith.addf %92, %91 : vector<2x128xf32>
    %94 = arith.divf %92, %93 : vector<2x128xf32>
    %95 = arith.mulf %86, %67 : vector<2x128xf32>
    %96 = arith.mulf %80, %88 : vector<2x128xf32>
    %97 = arith.addf %95, %96 : vector<2x128xf32>
    %98 = math.tanh %97 : vector<2x128xf32>
    %99 = arith.mulf %94, %98 : vector<2x128xf32>
    %c6 = arith.constant 6 : index
    %c0_32 = arith.constant 0 : index
    %100 = vector.load %arg11[%c6, %c0_32] : memref<16x512xf32, #tpu.memory_space<vmem>>, vector<2x512xf32>
    %101 = arith.truncf %99 : vector<2x128xf32> to vector<2x128xbf16>
    %c0_33 = arith.constant 0 : index
    %c0_34 = arith.constant 0 : index
    %102 = vector.load %arg3[%c0_33, %c0_34] : memref<128x512xbf16, #tpu.memory_space<vmem>>, vector<128x512xbf16>
    %cst_35 = arith.constant dense<0.000000e+00> : vector<2x512xf32>
    %103 = tpu.matmul %101, %102, %cst_35 {dimension_numbers = #tpu.dot_dimension_numbers<[1], [0], [0], [1], [0, 0, 1, 1], [], []>} : vector<2x128xbf16>, vector<128x512xbf16>, vector<2x512xf32> -> vector<2x512xf32>
    %104 = arith.addf %100, %103 : vector<2x512xf32>
    %105 = vector.extract_strided_slice %104 {offsets = [0, 0], sizes = [2, 128], strides = [1, 1]} : vector<2x512xf32> to vector<2x128xf32>
    %106 = arith.negf %105 : vector<2x128xf32>
    %107 = math.exp %106 : vector<2x128xf32>
    %cst_36 = arith.constant 1.000000e+00 : f32
    %108 = vector.broadcast %cst_36 : f32 to vector<2x128xf32>
    %109 = arith.addf %108, %107 : vector<2x128xf32>
    %110 = arith.divf %108, %109 : vector<2x128xf32>
    %111 = vector.extract_strided_slice %104 {offsets = [0, 128], sizes = [2, 128], strides = [1, 1]} : vector<2x512xf32> to vector<2x128xf32>
    %112 = arith.negf %111 : vector<2x128xf32>
    %113 = math.exp %112 : vector<2x128xf32>
    %cst_37 = arith.constant 1.000000e+00 : f32
    %114 = vector.broadcast %cst_37 : f32 to vector<2x128xf32>
    %115 = arith.addf %114, %113 : vector<2x128xf32>
    %116 = arith.divf %114, %115 : vector<2x128xf32>
    %117 = vector.extract_strided_slice %104 {offsets = [0, 256], sizes = [2, 128], strides = [1, 1]} : vector<2x512xf32> to vector<2x128xf32>
    %118 = math.tanh %117 : vector<2x128xf32>
    %119 = vector.extract_strided_slice %104 {offsets = [0, 384], sizes = [2, 128], strides = [1, 1]} : vector<2x512xf32> to vector<2x128xf32>
    %120 = arith.negf %119 : vector<2x128xf32>
    %121 = math.exp %120 : vector<2x128xf32>
    %cst_38 = arith.constant 1.000000e+00 : f32
    %122 = vector.broadcast %cst_38 : f32 to vector<2x128xf32>
    %123 = arith.addf %122, %121 : vector<2x128xf32>
    %124 = arith.divf %122, %123 : vector<2x128xf32>
    %125 = arith.mulf %116, %97 : vector<2x128xf32>
    %126 = arith.mulf %110, %118 : vector<2x128xf32>
    %127 = arith.addf %125, %126 : vector<2x128xf32>
    %128 = math.tanh %127 : vector<2x128xf32>
    %129 = arith.mulf %124, %128 : vector<2x128xf32>
    %c8 = arith.constant 8 : index
    %c0_39 = arith.constant 0 : index
    %130 = vector.load %arg11[%c8, %c0_39] : memref<16x512xf32, #tpu.memory_space<vmem>>, vector<2x512xf32>
    %131 = arith.truncf %129 : vector<2x128xf32> to vector<2x128xbf16>
    %c0_40 = arith.constant 0 : index
    %c0_41 = arith.constant 0 : index
    %132 = vector.load %arg3[%c0_40, %c0_41] : memref<128x512xbf16, #tpu.memory_space<vmem>>, vector<128x512xbf16>
    %cst_42 = arith.constant dense<0.000000e+00> : vector<2x512xf32>
    %133 = tpu.matmul %131, %132, %cst_42 {dimension_numbers = #tpu.dot_dimension_numbers<[1], [0], [0], [1], [0, 0, 1, 1], [], []>} : vector<2x128xbf16>, vector<128x512xbf16>, vector<2x512xf32> -> vector<2x512xf32>
    %134 = arith.addf %130, %133 : vector<2x512xf32>
    %135 = vector.extract_strided_slice %134 {offsets = [0, 0], sizes = [2, 128], strides = [1, 1]} : vector<2x512xf32> to vector<2x128xf32>
    %136 = arith.negf %135 : vector<2x128xf32>
    %137 = math.exp %136 : vector<2x128xf32>
    %cst_43 = arith.constant 1.000000e+00 : f32
    %138 = vector.broadcast %cst_43 : f32 to vector<2x128xf32>
    %139 = arith.addf %138, %137 : vector<2x128xf32>
    %140 = arith.divf %138, %139 : vector<2x128xf32>
    %141 = vector.extract_strided_slice %134 {offsets = [0, 128], sizes = [2, 128], strides = [1, 1]} : vector<2x512xf32> to vector<2x128xf32>
    %142 = arith.negf %141 : vector<2x128xf32>
    %143 = math.exp %142 : vector<2x128xf32>
    %cst_44 = arith.constant 1.000000e+00 : f32
    %144 = vector.broadcast %cst_44 : f32 to vector<2x128xf32>
    %145 = arith.addf %144, %143 : vector<2x128xf32>
    %146 = arith.divf %144, %145 : vector<2x128xf32>
    %147 = vector.extract_strided_slice %134 {offsets = [0, 256], sizes = [2, 128], strides = [1, 1]} : vector<2x512xf32> to vector<2x128xf32>
    %148 = math.tanh %147 : vector<2x128xf32>
    %149 = vector.extract_strided_slice %134 {offsets = [0, 384], sizes = [2, 128], strides = [1, 1]} : vector<2x512xf32> to vector<2x128xf32>
    %150 = arith.negf %149 : vector<2x128xf32>
    %151 = math.exp %150 : vector<2x128xf32>
    %cst_45 = arith.constant 1.000000e+00 : f32
    %152 = vector.broadcast %cst_45 : f32 to vector<2x128xf32>
    %153 = arith.addf %152, %151 : vector<2x128xf32>
    %154 = arith.divf %152, %153 : vector<2x128xf32>
    %155 = arith.mulf %146, %127 : vector<2x128xf32>
    %156 = arith.mulf %140, %148 : vector<2x128xf32>
    %157 = arith.addf %155, %156 : vector<2x128xf32>
    %158 = math.tanh %157 : vector<2x128xf32>
    %159 = arith.mulf %154, %158 : vector<2x128xf32>
    %c10 = arith.constant 10 : index
    %c0_46 = arith.constant 0 : index
    %160 = vector.load %arg11[%c10, %c0_46] : memref<16x512xf32, #tpu.memory_space<vmem>>, vector<2x512xf32>
    %161 = arith.truncf %159 : vector<2x128xf32> to vector<2x128xbf16>
    %c0_47 = arith.constant 0 : index
    %c0_48 = arith.constant 0 : index
    %162 = vector.load %arg3[%c0_47, %c0_48] : memref<128x512xbf16, #tpu.memory_space<vmem>>, vector<128x512xbf16>
    %cst_49 = arith.constant dense<0.000000e+00> : vector<2x512xf32>
    %163 = tpu.matmul %161, %162, %cst_49 {dimension_numbers = #tpu.dot_dimension_numbers<[1], [0], [0], [1], [0, 0, 1, 1], [], []>} : vector<2x128xbf16>, vector<128x512xbf16>, vector<2x512xf32> -> vector<2x512xf32>
    %164 = arith.addf %160, %163 : vector<2x512xf32>
    %165 = vector.extract_strided_slice %164 {offsets = [0, 0], sizes = [2, 128], strides = [1, 1]} : vector<2x512xf32> to vector<2x128xf32>
    %166 = arith.negf %165 : vector<2x128xf32>
    %167 = math.exp %166 : vector<2x128xf32>
    %cst_50 = arith.constant 1.000000e+00 : f32
    %168 = vector.broadcast %cst_50 : f32 to vector<2x128xf32>
    %169 = arith.addf %168, %167 : vector<2x128xf32>
    %170 = arith.divf %168, %169 : vector<2x128xf32>
    %171 = vector.extract_strided_slice %164 {offsets = [0, 128], sizes = [2, 128], strides = [1, 1]} : vector<2x512xf32> to vector<2x128xf32>
    %172 = arith.negf %171 : vector<2x128xf32>
    %173 = math.exp %172 : vector<2x128xf32>
    %cst_51 = arith.constant 1.000000e+00 : f32
    %174 = vector.broadcast %cst_51 : f32 to vector<2x128xf32>
    %175 = arith.addf %174, %173 : vector<2x128xf32>
    %176 = arith.divf %174, %175 : vector<2x128xf32>
    %177 = vector.extract_strided_slice %164 {offsets = [0, 256], sizes = [2, 128], strides = [1, 1]} : vector<2x512xf32> to vector<2x128xf32>
    %178 = math.tanh %177 : vector<2x128xf32>
    %179 = vector.extract_strided_slice %164 {offsets = [0, 384], sizes = [2, 128], strides = [1, 1]} : vector<2x512xf32> to vector<2x128xf32>
    %180 = arith.negf %179 : vector<2x128xf32>
    %181 = math.exp %180 : vector<2x128xf32>
    %cst_52 = arith.constant 1.000000e+00 : f32
    %182 = vector.broadcast %cst_52 : f32 to vector<2x128xf32>
    %183 = arith.addf %182, %181 : vector<2x128xf32>
    %184 = arith.divf %182, %183 : vector<2x128xf32>
    %185 = arith.mulf %176, %157 : vector<2x128xf32>
    %186 = arith.mulf %170, %178 : vector<2x128xf32>
    %187 = arith.addf %185, %186 : vector<2x128xf32>
    %188 = math.tanh %187 : vector<2x128xf32>
    %189 = arith.mulf %184, %188 : vector<2x128xf32>
    %c12 = arith.constant 12 : index
    %c0_53 = arith.constant 0 : index
    %190 = vector.load %arg11[%c12, %c0_53] : memref<16x512xf32, #tpu.memory_space<vmem>>, vector<2x512xf32>
    %191 = arith.truncf %189 : vector<2x128xf32> to vector<2x128xbf16>
    %c0_54 = arith.constant 0 : index
    %c0_55 = arith.constant 0 : index
    %192 = vector.load %arg3[%c0_54, %c0_55] : memref<128x512xbf16, #tpu.memory_space<vmem>>, vector<128x512xbf16>
    %cst_56 = arith.constant dense<0.000000e+00> : vector<2x512xf32>
    %193 = tpu.matmul %191, %192, %cst_56 {dimension_numbers = #tpu.dot_dimension_numbers<[1], [0], [0], [1], [0, 0, 1, 1], [], []>} : vector<2x128xbf16>, vector<128x512xbf16>, vector<2x512xf32> -> vector<2x512xf32>
    %194 = arith.addf %190, %193 : vector<2x512xf32>
    %195 = vector.extract_strided_slice %194 {offsets = [0, 0], sizes = [2, 128], strides = [1, 1]} : vector<2x512xf32> to vector<2x128xf32>
    %196 = arith.negf %195 : vector<2x128xf32>
    %197 = math.exp %196 : vector<2x128xf32>
    %cst_57 = arith.constant 1.000000e+00 : f32
    %198 = vector.broadcast %cst_57 : f32 to vector<2x128xf32>
    %199 = arith.addf %198, %197 : vector<2x128xf32>
    %200 = arith.divf %198, %199 : vector<2x128xf32>
    %201 = vector.extract_strided_slice %194 {offsets = [0, 128], sizes = [2, 128], strides = [1, 1]} : vector<2x512xf32> to vector<2x128xf32>
    %202 = arith.negf %201 : vector<2x128xf32>
    %203 = math.exp %202 : vector<2x128xf32>
    %cst_58 = arith.constant 1.000000e+00 : f32
    %204 = vector.broadcast %cst_58 : f32 to vector<2x128xf32>
    %205 = arith.addf %204, %203 : vector<2x128xf32>
    %206 = arith.divf %204, %205 : vector<2x128xf32>
    %207 = vector.extract_strided_slice %194 {offsets = [0, 256], sizes = [2, 128], strides = [1, 1]} : vector<2x512xf32> to vector<2x128xf32>
    %208 = math.tanh %207 : vector<2x128xf32>
    %209 = vector.extract_strided_slice %194 {offsets = [0, 384], sizes = [2, 128], strides = [1, 1]} : vector<2x512xf32> to vector<2x128xf32>
    %210 = arith.negf %209 : vector<2x128xf32>
    %211 = math.exp %210 : vector<2x128xf32>
    %cst_59 = arith.constant 1.000000e+00 : f32
    %212 = vector.broadcast %cst_59 : f32 to vector<2x128xf32>
    %213 = arith.addf %212, %211 : vector<2x128xf32>
    %214 = arith.divf %212, %213 : vector<2x128xf32>
    %215 = arith.mulf %206, %187 : vector<2x128xf32>
    %216 = arith.mulf %200, %208 : vector<2x128xf32>
    %217 = arith.addf %215, %216 : vector<2x128xf32>
    %218 = math.tanh %217 : vector<2x128xf32>
    %219 = arith.mulf %214, %218 : vector<2x128xf32>
    %c14 = arith.constant 14 : index
    %c0_60 = arith.constant 0 : index
    %220 = vector.load %arg11[%c14, %c0_60] : memref<16x512xf32, #tpu.memory_space<vmem>>, vector<2x512xf32>
    %221 = arith.truncf %219 : vector<2x128xf32> to vector<2x128xbf16>
    %c0_61 = arith.constant 0 : index
    %c0_62 = arith.constant 0 : index
    %222 = vector.load %arg3[%c0_61, %c0_62] : memref<128x512xbf16, #tpu.memory_space<vmem>>, vector<128x512xbf16>
    %cst_63 = arith.constant dense<0.000000e+00> : vector<2x512xf32>
    %223 = tpu.matmul %221, %222, %cst_63 {dimension_numbers = #tpu.dot_dimension_numbers<[1], [0], [0], [1], [0, 0, 1, 1], [], []>} : vector<2x128xbf16>, vector<128x512xbf16>, vector<2x512xf32> -> vector<2x512xf32>
    %224 = arith.addf %220, %223 : vector<2x512xf32>
    %225 = vector.extract_strided_slice %224 {offsets = [0, 0], sizes = [2, 128], strides = [1, 1]} : vector<2x512xf32> to vector<2x128xf32>
    %226 = arith.negf %225 : vector<2x128xf32>
    %227 = math.exp %226 : vector<2x128xf32>
    %cst_64 = arith.constant 1.000000e+00 : f32
    %228 = vector.broadcast %cst_64 : f32 to vector<2x128xf32>
    %229 = arith.addf %228, %227 : vector<2x128xf32>
    %230 = arith.divf %228, %229 : vector<2x128xf32>
    %231 = vector.extract_strided_slice %224 {offsets = [0, 128], sizes = [2, 128], strides = [1, 1]} : vector<2x512xf32> to vector<2x128xf32>
    %232 = arith.negf %231 : vector<2x128xf32>
    %233 = math.exp %232 : vector<2x128xf32>
    %cst_65 = arith.constant 1.000000e+00 : f32
    %234 = vector.broadcast %cst_65 : f32 to vector<2x128xf32>
    %235 = arith.addf %234, %233 : vector<2x128xf32>
    %236 = arith.divf %234, %235 : vector<2x128xf32>
    %237 = vector.extract_strided_slice %224 {offsets = [0, 256], sizes = [2, 128], strides = [1, 1]} : vector<2x512xf32> to vector<2x128xf32>
    %238 = math.tanh %237 : vector<2x128xf32>
    %239 = vector.extract_strided_slice %224 {offsets = [0, 384], sizes = [2, 128], strides = [1, 1]} : vector<2x512xf32> to vector<2x128xf32>
    %240 = arith.negf %239 : vector<2x128xf32>
    %241 = math.exp %240 : vector<2x128xf32>
    %cst_66 = arith.constant 1.000000e+00 : f32
    %242 = vector.broadcast %cst_66 : f32 to vector<2x128xf32>
    %243 = arith.addf %242, %241 : vector<2x128xf32>
    %244 = arith.divf %242, %243 : vector<2x128xf32>
    %245 = arith.mulf %236, %217 : vector<2x128xf32>
    %246 = arith.mulf %230, %238 : vector<2x128xf32>
    %247 = arith.addf %245, %246 : vector<2x128xf32>
    %248 = math.tanh %247 : vector<2x128xf32>
    %249 = arith.mulf %244, %248 : vector<2x128xf32>
    %c0_67 = arith.constant 0 : index
    %c14_68 = arith.constant 14 : index
    %c0_69 = arith.constant 0 : index
    %250 = vector.load %arg1[%c0_67, %c14_68, %c0_69] : memref<1x16x4xbf16, #tpu.memory_space<vmem>>, vector<1x2x4xbf16>
    %251 = vector.shape_cast %250 : vector<1x2x4xbf16> to vector<2x4xbf16>
    %c0_70 = arith.constant 0 : index
    %c0_71 = arith.constant 0 : index
    %252 = vector.load %arg5[%c0_70, %c0_71] : memref<4x512xbf16, #tpu.memory_space<vmem>>, vector<4x512xbf16>
    %cst_72 = arith.constant dense<0.000000e+00> : vector<2x512xf32>
    %253 = tpu.matmul %251, %252, %cst_72 {dimension_numbers = #tpu.dot_dimension_numbers<[1], [0], [0], [1], [0, 0, 1, 1], [], []>} : vector<2x4xbf16>, vector<4x512xbf16>, vector<2x512xf32> -> vector<2x512xf32>
    %c0_73 = arith.constant 0 : index
    %c0_74 = arith.constant 0 : index
    %254 = vector.load %arg6[%c0_73, %c0_74] : memref<1x512xf32, #tpu.memory_space<vmem>>, vector<1x512xf32>
    %255 = vector.broadcast %254 : vector<1x512xf32> to vector<2x512xf32>
    %256 = arith.addf %253, %255 : vector<2x512xf32>
    %257 = vector.extract_strided_slice %256 {offsets = [0, 0], sizes = [2, 128], strides = [1, 1]} : vector<2x512xf32> to vector<2x128xf32>
    %258 = arith.negf %257 : vector<2x128xf32>
    %259 = math.exp %258 : vector<2x128xf32>
    %cst_75 = arith.constant 1.000000e+00 : f32
    %260 = vector.broadcast %cst_75 : f32 to vector<2x128xf32>
    %261 = arith.addf %260, %259 : vector<2x128xf32>
    %262 = arith.divf %260, %261 : vector<2x128xf32>
    %263 = vector.extract_strided_slice %256 {offsets = [0, 256], sizes = [2, 128], strides = [1, 1]} : vector<2x512xf32> to vector<2x128xf32>
    %264 = math.tanh %263 : vector<2x128xf32>
    %265 = vector.extract_strided_slice %256 {offsets = [0, 384], sizes = [2, 128], strides = [1, 1]} : vector<2x512xf32> to vector<2x128xf32>
    %266 = arith.negf %265 : vector<2x128xf32>
    %267 = math.exp %266 : vector<2x128xf32>
    %cst_76 = arith.constant 1.000000e+00 : f32
    %268 = vector.broadcast %cst_76 : f32 to vector<2x128xf32>
    %269 = arith.addf %268, %267 : vector<2x128xf32>
    %270 = arith.divf %268, %269 : vector<2x128xf32>
    %271 = arith.mulf %262, %264 : vector<2x128xf32>
    %272 = math.tanh %271 : vector<2x128xf32>
    %273 = arith.mulf %270, %272 : vector<2x128xf32>
    %274 = arith.truncf %249 : vector<2x128xf32> to vector<2x128xbf16>
    %c0_77 = arith.constant 0 : index
    %c0_78 = arith.constant 0 : index
    %275 = vector.load %arg7[%c0_77, %c0_78] : memref<128x128xbf16, #tpu.memory_space<vmem>>, vector<128x128xbf16>
    %cst_79 = arith.constant dense<0.000000e+00> : vector<2x128xf32>
    %276 = tpu.matmul %274, %275, %cst_79 {dimension_numbers = #tpu.dot_dimension_numbers<[1], [0], [0], [1], [0, 0, 1, 1], [], []>} : vector<2x128xbf16>, vector<128x128xbf16>, vector<2x128xf32> -> vector<2x128xf32>
    %277 = arith.truncf %273 : vector<2x128xf32> to vector<2x128xbf16>
    %c0_80 = arith.constant 0 : index
    %c0_81 = arith.constant 0 : index
    %278 = vector.load %arg8[%c0_80, %c0_81] : memref<128x128xbf16, #tpu.memory_space<vmem>>, vector<128x128xbf16>
    %cst_82 = arith.constant dense<0.000000e+00> : vector<2x128xf32>
    %279 = tpu.matmul %277, %278, %cst_82 {dimension_numbers = #tpu.dot_dimension_numbers<[1], [0], [0], [1], [0, 0, 1, 1], [], []>} : vector<2x128xbf16>, vector<128x128xbf16>, vector<2x128xf32> -> vector<2x128xf32>
    %280 = arith.addf %276, %279 : vector<2x128xf32>
    %c0_83 = arith.constant 0 : index
    %c0_84 = arith.constant 0 : index
    %281 = vector.load %arg9[%c0_83, %c0_84] : memref<1x128xf32, #tpu.memory_space<vmem>>, vector<1x128xf32>
    %282 = vector.broadcast %281 : vector<1x128xf32> to vector<2x128xf32>
    %283 = arith.addf %280, %282 : vector<2x128xf32>
    %cst_85 = arith.constant dense<0xFF800000> : vector<2xf32>
    %284 = vector.multi_reduction <maximumf>, %283, %cst_85 [1] : vector<2x128xf32> to vector<2xf32>
    %285 = vector.shape_cast %284 : vector<2xf32> to vector<2x1xf32>
    %286 = vector.broadcast %285 : vector<2x1xf32> to vector<2x128xf32>
    %287 = arith.subf %283, %286 : vector<2x128xf32>
    %288 = math.exp %287 : vector<2x128xf32>
    %cst_86 = arith.constant dense<0.000000e+00> : vector<2xf32>
    %289 = vector.multi_reduction <add>, %288, %cst_86 [1] : vector<2x128xf32> to vector<2xf32>
    %290 = vector.shape_cast %289 : vector<2xf32> to vector<2x1xf32>
    %291 = tpu.reciprocal %290 {approx = true} : vector<2x1xf32> -> vector<2x1xf32>
    %292 = arith.mulf %290, %291 : vector<2x1xf32>
    %cst_87 = arith.constant 2.000000e+00 : f32
    %293 = vector.broadcast %cst_87 : f32 to vector<2x1xf32>
    %294 = arith.subf %293, %292 : vector<2x1xf32>
    %295 = arith.mulf %291, %294 : vector<2x1xf32>
    %296 = arith.mulf %290, %295 : vector<2x1xf32>
    %cst_88 = arith.constant 2.000000e+00 : f32
    %297 = vector.broadcast %cst_88 : f32 to vector<2x1xf32>
    %298 = arith.subf %297, %296 : vector<2x1xf32>
    %299 = arith.mulf %295, %298 : vector<2x1xf32>
    %300 = vector.broadcast %299 : vector<2x1xf32> to vector<2x128xf32>
    %301 = arith.mulf %288, %300 : vector<2x128xf32>
    %c0_89 = arith.constant 0 : index
    %c0_90 = arith.constant 0 : index
    %302 = vector.load %arg10[%c0_89, %c0_90] : memref<2x128xf32, #tpu.memory_space<vmem>>, vector<2x128xf32>
    tpu.vector_store %arg10[%c0_89, %c0_90], %301 {strides = array<i32>} : memref<2x128xf32, #tpu.memory_space<vmem>>, vector<2x128xf32>,
    return
  }
  func.func @transform_0(%arg0: i32) -> (i32, i32, i32) {
    %c0_i32 = arith.constant 0 : i32
    %c0_i32_0 = arith.constant 0 : i32
    %c0_i32_1 = arith.constant 0 : i32
    return %arg0, %c0_i32, %c0_i32_0 : i32, i32, i32
  }
  func.func @transform_1(%arg0: i32) -> (i32, i32) {
    %c0_i32 = arith.constant 0 : i32
    %c0_i32_0 = arith.constant 0 : i32
    %c0_i32_1 = arith.constant 0 : i32
    return %c0_i32, %c0_i32_0 : i32, i32
  }
  func.func @transform_2(%arg0: i32) -> (i32, i32) {
    %c0_i32 = arith.constant 0 : i32
    %c0_i32_0 = arith.constant 0 : i32
    %c0_i32_1 = arith.constant 0 : i32
    return %c0_i32, %c0_i32_0 : i32, i32
  }
  func.func @transform_3(%arg0: i32) -> (i32, i32) {
    %c0_i32 = arith.constant 0 : i32
    %c0_i32_0 = arith.constant 0 : i32
    %c0_i32_1 = arith.constant 0 : i32
    return %c0_i32, %c0_i32_0 : i32, i32
  }
  func.func @transform_4(%arg0: i32) -> (i32, i32) {
    %c0_i32 = arith.constant 0 : i32
    %c0_i32_0 = arith.constant 0 : i32
    %c0_i32_1 = arith.constant 0 : i32
    return %c0_i32, %c0_i32_0 : i32, i32
  }
  func.func @transform_5(%arg0: i32) -> (i32, i32) {
    %c0_i32 = arith.constant 0 : i32
    %c0_i32_0 = arith.constant 0 : i32
    %c0_i32_1 = arith.constant 0 : i32
    return %c0_i32, %c0_i32_0 : i32, i32
  }
  func.func @transform_6(%arg0: i32) -> (i32, i32) {
    %c0_i32 = arith.constant 0 : i32
    %c0_i32_0 = arith.constant 0 : i32
    %c0_i32_1 = arith.constant 0 : i32
    return %c0_i32, %c0_i32_0 : i32, i32
  }
  func.func @transform_7(%arg0: i32) -> (i32, i32) {
    %c0_i32 = arith.constant 0 : i32
    %c0_i32_0 = arith.constant 0 : i32
    %c0_i32_1 = arith.constant 0 : i32
    return %c0_i32, %c0_i32_0 : i32, i32
  }
  func.func @transform_8(%arg0: i32) -> (i32, i32) {
    %c0_i32 = arith.constant 0 : i32
    %c0_i32_0 = arith.constant 0 : i32
    %c0_i32_1 = arith.constant 0 : i32
    return %c0_i32, %c0_i32_0 : i32, i32
  }
  func.func @transform_9(%arg0: i32) -> (i32, i32) {
    %c0_i32 = arith.constant 0 : i32
    %c0_i32_0 = arith.constant 0 : i32
    return %arg0, %c0_i32 : i32, i32
  }
}

</mosaic_0001>

<llo_original>
// kernel: bilstm_model_forward.1
$region0: #{bilstm_model_forward.1}
  #allocation0 [shape = 'u32[]', space=smem, size = 0x4, offset = 0x4, fixed_abs, tag = 'smem constant byte address 0x4 - core index']
  #allocation1 [shape = 'u32[144,128]{1,0:T(1,128)}', space=vmem, size = 0x12000, scoped, tag = 'internal scratch']
  #allocation2 [shape = 'f32[16,512]{1,0:T(8,128)}', space=vmem, size = 0x8000, scoped, tag = 'scratch operand']
  %s0 = inlined_call_operand.vmem [shape: bf16[1,16,4], index: 0, kind: input, shape index: {}]
  %s1 = inlined_call_operand.vmem [shape: bf16[4,512], index: 1, kind: input, shape index: {}]
  %s2 = inlined_call_operand.vmem [shape: bf16[128,512], index: 2, kind: input, shape index: {}]
  %s3 = inlined_call_operand.vmem [shape: f32[1,512], index: 3, kind: input, shape index: {}]
  %s4 = inlined_call_operand.vmem [shape: bf16[4,512], index: 4, kind: input, shape index: {}]
  %s5 = inlined_call_operand.vmem [shape: f32[1,512], index: 5, kind: input, shape index: {}]
  %s6 = inlined_call_operand.vmem [shape: bf16[128,128], index: 6, kind: input, shape index: {}]
  %s7 = inlined_call_operand.vmem [shape: bf16[128,128], index: 7, kind: input, shape index: {}]
  %s8 = inlined_call_operand.vmem [shape: f32[1,128], index: 8, kind: input, shape index: {}]
  %s9 = inlined_call_operand.hbm [shape: f32[2,128], index: 9, kind: output, shape index: {}]
  %s10 = sld [smem:[#allocation0]]
  $region46: #{bilstm_model_forward.1} parent=0
    _
  %s12 = ssub.s32 1, %s10
  %s13 = scalar_select 0, %s12, %s10
  $region1: #{bilstm_model_forward.1} parent=0
    #allocation3 [shape = 'u8[1024]{0}', space=vmem, size = 0x400, scoped, tag = 'output window, operand 0, single buffered']
    #allocation4 [shape = 's32[1]{0}', space=sflag, size = 0x4, scoped, tag = 'scoped memory for bilstm_model_forward.1']
    %14 = vsyncpa [#allocation4], 0
    // Predicated region
    $region2: #{bilstm_model_forward.1} parent=1 // pred_check
      _
    $region3: #{bilstm_model_forward.1} parent=1 // pred_check_branch
      %16 = sbr.rel (0) target = $region5
    $region4: #{bilstm_model_forward.1} parent=1 // pred_region
      _
    $region5: #{bilstm_model_forward.1} parent=1 // pred_fallthru
      _
    // Predicated region
    $region6: #{bilstm_model_forward.1} parent=1 // pred_check
      _
    $region7: #{bilstm_model_forward.1} parent=1 // pred_check_branch
      %18 = sbr.rel (0) target = $region9
    $region8: #{bilstm_model_forward.1} parent=1 // pred_region
      _
    $region9: #{bilstm_model_forward.1} parent=1 // pred_fallthru
      _
    // Predicated region
    $region10: #{bilstm_model_forward.1} parent=1 // pred_check
      _
    $region11: #{bilstm_model_forward.1} parent=1 // pred_check_branch
      %20 = sbr.rel (0) target = $region13
    $region12: #{bilstm_model_forward.1} parent=1 // pred_region
      _
    $region13: #{bilstm_model_forward.1} parent=1 // pred_fallthru
      _
    // Predicated region
    $region14: #{bilstm_model_forward.1} parent=1 // pred_check
      _
    $region15: #{bilstm_model_forward.1} parent=1 // pred_check_branch
      %22 = sbr.rel (0) target = $region17
    $region16: #{bilstm_model_forward.1} parent=1 // pred_region
      _
    $region17: #{bilstm_model_forward.1} parent=1 // pred_fallthru
      _
    // Predicated region
    $region18: #{bilstm_model_forward.1} parent=1 // pred_check
      _
    $region19: #{bilstm_model_forward.1} parent=1 // pred_check_branch
      %24 = sbr.rel (0) target = $region21
    $region20: #{bilstm_model_forward.1} parent=1 // pred_region
      _
    $region21: #{bilstm_model_forward.1} parent=1 // pred_fallthru
      _
    // Predicated region
    $region22: #{bilstm_model_forward.1} parent=1 // pred_check
      _
    $region23: #{bilstm_model_forward.1} parent=1 // pred_check_branch
      %26 = sbr.rel (0) target = $region25
    $region24: #{bilstm_model_forward.1} parent=1 // pred_region
      _
    $region25: #{bilstm_model_forward.1} parent=1 // pred_fallthru
      _
    // Predicated region
    $region26: #{bilstm_model_forward.1} parent=1 // pred_check
      _
    $region27: #{bilstm_model_forward.1} parent=1 // pred_check_branch
      %28 = sbr.rel (0) target = $region29
    $region28: #{bilstm_model_forward.1} parent=1 // pred_region
      _
    $region29: #{bilstm_model_forward.1} parent=1 // pred_fallthru
      _
    // Predicated region
    $region30: #{bilstm_model_forward.1} parent=1 // pred_check
      _
    $region31: #{bilstm_model_forward.1} parent=1 // pred_check_branch
      %30 = sbr.rel (0) target = $region33
    $region32: #{bilstm_model_forward.1} parent=1 // pred_region
      _
    $region33: #{bilstm_model_forward.1} parent=1 // pred_fallthru
      _
    // Predicated region
    $region34: #{bilstm_model_forward.1} parent=1 // pred_check
      _
    $region35: #{bilstm_model_forward.1} parent=1 // pred_check_branch
      %32 = sbr.rel (0) target = $region37
    $region36: #{bilstm_model_forward.1} parent=1 // pred_region
      _
    $region37: #{bilstm_model_forward.1} parent=1 // pred_fallthru
      _
    %v34 = vld [vmem:[%s0] sm:$0xf]
    %v35 = vld [vmem:[%s0 + $0x4] sm:$0xf]
    %v36 = vld [vmem:[%s1] sm:$0xff]
    %v37 = vld [vmem:[%s3] sm:$0xf]
    %v39 = vlaneseq
    %v40 = vshrl.u32 %v39, 7
    %v41 = vsub.s32 0, %v40
    %v42 = vrot.slane %v37, %v41
    %v43 = vlaneseq
    %v44 = vshrl.u32 %v43, 7
    %v45 = vsub.s32 1, %v44
    %v46 = vrot.slane %v37, %v45
    %v47 = vlaneseq
    %v48 = vshrl.u32 %v47, 7
    %v49 = vsub.s32 2, %v48
    %v50 = vrot.slane %v37, %v49
    %v51 = vlaneseq
    %v52 = vshrl.u32 %v51, 7
    %v53 = vsub.s32 3, %v52
    %v54 = vrot.slane %v37, %v53
    %v61 = vunpack.c.l.b16 %v34
    %v62 = vunpack.c.l.b16 %v35
    %v63 = vpack.c.b16 %v62, %v61
    %v65 = vcombine.high %v36, %v36
    %v67 = vunpack.c.l.s4 1983009808
    %v68 = vunpack.c.0.s8 %v67
    %v69 = vlaneseq
    %v70 = vshrl.u32 %v69, 7
    %v71 = vsub.s32 %v68, %v70
    %v72 = vrot.slane %v36, %v71
    %v74 = vunpack.c.l.s4 1983009808
    %v75 = vunpack.c.0.s8 %v74
    %v76 = vlaneseq
    %v77 = vshrl.u32 %v76, 7
    %v78 = vsub.s32 %v75, %v77
    %v79 = vrot.slane %v65, %v78
    %v80 = vcombine.high %v72, %v72
    %v81 = vcombine.high %v79, %v79
    %vm82 = vcmask 31744
    %v84 = vsel %vm82, %v63, 0
    %vm86 = vcmask 1041408
    %v88 = vsel %vm86, %v72, 0
    %v91 = vsel %vm86, %v80, 0
    %v94 = vsel %vm86, %v79, 0
    %v97 = vsel %vm86, %v81, 0
    %99 = vmatprep.subr.bf16.mxu0 0
    %100 = vmatpush1.bf16.msra.mxu0 0
    %101 = vmatprep.subr.bf16.mxu0 0
    %102 = vmatpush1.bf16.msra.mxu0 0
    %103 = vmatprep.subr.bf16.mxu0 0
    %104 = vmatpush1.bf16.msra.mxu0 0
    %105 = vmatprep.subr.bf16.mxu0 0
    %106 = vmatpush1.bf16.msra.mxu0 0
    %107 = vmatprep.subr.bf16.mxu0 0
    %108 = vmatpush1.bf16.msra.mxu0 0
    %109 = vmatprep.subr.bf16.mxu0 0
    %110 = vmatpush1.bf16.msra.mxu0 0
    %111 = vmatprep.subr.bf16.mxu0 0
    %112 = vmatpush1.bf16.msra.mxu0 0
    %113 = vmatprep.subr.bf16.mxu0 %v91
    %114 = vmatpush1.bf16.msra.mxu0 %v88
    %115 = vmatprep.subr.bf16.mxu0 0
    %116 = vmatpush2.bf16.msra.mxu0 0
    %117 = vmatprep.subr.bf16.mxu0 0
    %118 = vmatpush2.bf16.msra.mxu0 0
    %119 = vmatprep.subr.bf16.mxu0 0
    %120 = vmatpush2.bf16.msra.mxu0 0
    %121 = vmatprep.subr.bf16.mxu0 0
    %122 = vmatpush2.bf16.msra.mxu0 0
    %123 = vmatprep.subr.bf16.mxu0 0
    %124 = vmatpush2.bf16.msra.mxu0 0
    %125 = vmatprep.subr.bf16.mxu0 0
    %126 = vmatpush2.bf16.msra.mxu0 0
    %127 = vmatprep.subr.bf16.mxu0 0
    %128 = vmatpush2.bf16.msra.mxu0 0
    %129 = vmatprep.subr.bf16.mxu0 0
    %130 = vmatpush2.bf16.msra.mxu0 0
    %131 = vmatprep.mubr.bf16.mxu0 0
    %132 = vmatmul.mubr.bf16.gmra.mxu0 %v84
    %v133 = vpop.f32.mrf.mxu0
    %v134 = vadd.f32 %v42, %v133
    %v135 = vpop.f32.mrf.mxu0
    %v136 = vadd.f32 %v46, %v135
    %v137 = vpop.f32.mrf.mxu0
    %v138 = vadd.f32 %v42, %v137
    %v139 = vpop.f32.mrf.mxu0
    %v140 = vadd.f32 %v46, %v139
    %141 = vdwg.mxu0
    %142 = vmatprep.subr.bf16.mxu0 0
    %143 = vmatpush1.bf16.msra.mxu0 0
    %144 = vmatprep.subr.bf16.mxu0 0
    %145 = vmatpush1.bf16.msra.mxu0 0
    %146 = vmatprep.subr.bf16.mxu0 0
    %147 = vmatpush1.bf16.msra.mxu0 0
    %148 = vmatprep.subr.bf16.mxu0 0
    %149 = vmatpush1.bf16.msra.mxu0 0
    %150 = vmatprep.subr.bf16.mxu0 0
    %151 = vmatpush1.bf16.msra.mxu0 0
    %152 = vmatprep.subr.bf16.mxu0 0
    %153 = vmatpush1.bf16.msra.mxu0 0
    %154 = vmatprep.subr.bf16.mxu0 0
    %155 = vmatpush1.bf16.msra.mxu0 0
    %156 = vmatprep.subr.bf16.mxu0 %v97
    %157 = vmatpush1.bf16.msra.mxu0 %v94
    %158 = vmatprep.subr.bf16.mxu0 0
    %159 = vmatpush2.bf16.msra.mxu0 0
    %160 = vmatprep.subr.bf16.mxu0 0
    %161 = vmatpush2.bf16.msra.mxu0 0
    %162 = vmatprep.subr.bf16.mxu0 0
    %163 = vmatpush2.bf16.msra.mxu0 0
    %164 = vmatprep.subr.bf16.mxu0 0
    %165 = vmatpush2.bf16.msra.mxu0 0
    %166 = vmatprep.subr.bf16.mxu0 0
    %167 = vmatpush2.bf16.msra.mxu0 0
    %168 = vmatprep.subr.bf16.mxu0 0
    %169 = vmatpush2.bf16.msra.mxu0 0
    %170 = vmatprep.subr.bf16.mxu0 0
    %171 = vmatpush2.bf16.msra.mxu0 0
    %172 = vmatprep.subr.bf16.mxu0 0
    %173 = vmatpush2.bf16.msra.mxu0 0
    %174 = vmatprep.mubr.bf16.mxu0 0
    %175 = vmatmul.mubr.bf16.gmra.mxu0 %v84
    %v176 = vpop.f32.mrf.mxu0
    %v177 = vadd.f32 %v50, %v176
    %v178 = vpop.f32.mrf.mxu0
    %v179 = vadd.f32 %v54, %v178
    %v180 = vpop.f32.mrf.mxu0
    %v181 = vadd.f32 %v50, %v180
    %v182 = vpop.f32.mrf.mxu0
    %v183 = vadd.f32 %v54, %v182
    %184 = vdwg.mxu0
    %185 = vst [vmem:[#allocation2] sm:$0xff] %v134
    %186 = vst [vmem:[#allocation2 + $0x8] sm:$0xff] %v136
    %187 = vst [vmem:[#allocation2 + $0x10] sm:$0xff] %v177
    %188 = vst [vmem:[#allocation2 + $0x18] sm:$0xff] %v179
    %189 = vst [vmem:[#allocation2 + $0x20] sm:$0xff] %v138
    %190 = vst [vmem:[#allocation2 + $0x28] sm:$0xff] %v140
    %191 = vst [vmem:[#allocation2 + $0x30] sm:$0xff] %v181
    %192 = vst [vmem:[#allocation2 + $0x38] sm:$0xff] %v183
    %v193 = vld [vmem:[#allocation2] sm:$0x3]
    %v194 = vld [vmem:[#allocation2 + $0x8] sm:$0x3]
    %v195 = vld [vmem:[#allocation2 + $0x10] sm:$0x3]
    %v196 = vld [vmem:[#allocation2 + $0x18] sm:$0x3]
    %v197 = vld [vmem:[%s2] sm:$0xff]
    %v198 = vld [vmem:[%s2 + $0x8] sm:$0xff]
    %v199 = vld [vmem:[%s2 + $0x10] sm:$0xff]
    %v200 = vld [vmem:[%s2 + $0x18] sm:$0xff]
    %v201 = vld [vmem:[%s2 + $0x20] sm:$0xff]
    %v202 = vld [vmem:[%s2 + $0x28] sm:$0xff]
    %v203 = vld [vmem:[%s2 + $0x30] sm:$0xff]
    %v204 = vld [vmem:[%s2 + $0x38] sm:$0xff]
    %v205 = vld [vmem:[%s2 + $0x40] sm:$0xff]
    %v206 = vld [vmem:[%s2 + $0x48] sm:$0xff]
    %v207 = vld [vmem:[%s2 + $0x50] sm:$0xff]
    %v208 = vld [vmem:[%s2 + $0x58] sm:$0xff]
    %v209 = vld [vmem:[%s2 + $0x60] sm:$0xff]
    %v210 = vld [vmem:[%s2 + $0x68] sm:$0xff]
    %v211 = vld [vmem:[%s2 + $0x70] sm:$0xff]
    %v212 = vld [vmem:[%s2 + $0x78] sm:$0xff]
    %v213 = vld [vmem:[%s2 + $0x80] sm:$0xff]
    %v214 = vld [vmem:[%s2 + $0x88] sm:$0xff]
    %v215 = vld [vmem:[%s2 + $0x90] sm:$0xff]
    %v216 = vld [vmem:[%s2 + $0x98] sm:$0xff]
    %v217 = vld [vmem:[%s2 + $0xa0] sm:$0xff]
    %v218 = vld [vmem:[%s2 + $0xa8] sm:$0xff]
    %v219 = vld [vmem:[%s2 + $0xb0] sm:$0xff]
    %v220 = vld [vmem:[%s2 + $0xb8] sm:$0xff]
    %v221 = vld [vmem:[%s2 + $0xc0] sm:$0xff]
    %v222 = vld [vmem:[%s2 + $0xc8] sm:$0xff]
    %v223 = vld [vmem:[%s2 + $0xd0] sm:$0xff]
    %v224 = vld [vmem:[%s2 + $0xd8] sm:$0xff]
    %v225 = vld [vmem:[%s2 + $0xe0] sm:$0xff]
    %v226 = vld [vmem:[%s2 + $0xe8] sm:$0xff]
    %v227 = vld [vmem:[%s2 + $0xf0] sm:$0xff]
    %v228 = vld [vmem:[%s2 + $0xf8] sm:$0xff]
    %v261 = vunpack.c.l.b16 %v197
    %v262 = vunpack.c.h.b16 %v197
    %v263 = vunpack.c.l.b16 %v198
    %v264 = vunpack.c.h.b16 %v198
    %v265 = vunpack.c.l.b16 %v199
    %v266 = vunpack.c.h.b16 %v199
    %v267 = vunpack.c.l.b16 %v200
    %v268 = vunpack.c.h.b16 %v200
    %v269 = vunpack.c.l.b16 %v201
    %v270 = vunpack.c.h.b16 %v201
    %v271 = vunpack.c.l.b16 %v202
    %v272 = vunpack.c.h.b16 %v202
    %v273 = vunpack.c.l.b16 %v203
    %v274 = vunpack.c.h.b16 %v203
    %v275 = vunpack.c.l.b16 %v204
    %v276 = vunpack.c.h.b16 %v204
    %v277 = vunpack.c.l.b16 %v205
    %v278 = vunpack.c.h.b16 %v205
    %v279 = vunpack.c.l.b16 %v206
    %v280 = vunpack.c.h.b16 %v206
    %v281 = vunpack.c.l.b16 %v207
    %v282 = vunpack.c.h.b16 %v207
    %v283 = vunpack.c.l.b16 %v208
    %v284 = vunpack.c.h.b16 %v208
    %v285 = vunpack.c.l.b16 %v209
    %v286 = vunpack.c.h.b16 %v209
    %v287 = vunpack.c.l.b16 %v210
    %v288 = vunpack.c.h.b16 %v210
    %v289 = vunpack.c.l.b16 %v211
    %v290 = vunpack.c.h.b16 %v211
    %v291 = vunpack.c.l.b16 %v212
    %v292 = vunpack.c.h.b16 %v212
    %v293 = vunpack.c.l.b16 %v213
    %v294 = vunpack.c.h.b16 %v213
    %v295 = vunpack.c.l.b16 %v214
    %v296 = vunpack.c.h.b16 %v214
    %v297 = vunpack.c.l.b16 %v215
    %v298 = vunpack.c.h.b16 %v215
    %v299 = vunpack.c.l.b16 %v216
    %v300 = vunpack.c.h.b16 %v216
    %v301 = vunpack.c.l.b16 %v217
    %v302 = vunpack.c.h.b16 %v217
    %v303 = vunpack.c.l.b16 %v218
    %v304 = vunpack.c.h.b16 %v218
    %v305 = vunpack.c.l.b16 %v219
    %v306 = vunpack.c.h.b16 %v219
    %v307 = vunpack.c.l.b16 %v220
    %v308 = vunpack.c.h.b16 %v220
    %v309 = vunpack.c.l.b16 %v221
    %v310 = vunpack.c.h.b16 %v221
    %v311 = vunpack.c.l.b16 %v222
    %v312 = vunpack.c.h.b16 %v222
    %v313 = vunpack.c.l.b16 %v223
    %v314 = vunpack.c.h.b16 %v223
    %v315 = vunpack.c.l.b16 %v224
    %v316 = vunpack.c.h.b16 %v224
    %v317 = vunpack.c.l.b16 %v225
    %v318 = vunpack.c.h.b16 %v225
    %v319 = vunpack.c.l.b16 %v226
    %v320 = vunpack.c.h.b16 %v226
    %v321 = vunpack.c.l.b16 %v227
    %v322 = vunpack.c.h.b16 %v227
    %v323 = vunpack.c.l.b16 %v228
    %v324 = vunpack.c.h.b16 %v228
    %v325 = vpack.c.b16 %v265, %v261
    %v326 = vpack.c.b16 %v266, %v262
    %v327 = vpack.c.b16 %v267, %v263
    %v328 = vpack.c.b16 %v268, %v264
    %v329 = vpack.c.b16 %v273, %v269
    %v330 = vpack.c.b16 %v274, %v270
    %v331 = vpack.c.b16 %v275, %v271
    %v332 = vpack.c.b16 %v276, %v272
    %v333 = vpack.c.b16 %v281, %v277
    %v334 = vpack.c.b16 %v282, %v278
    %v335 = vpack.c.b16 %v283, %v279
    %v336 = vpack.c.b16 %v284, %v280
    %v337 = vpack.c.b16 %v289, %v285
    %v338 = vpack.c.b16 %v290, %v286
    %v339 = vpack.c.b16 %v291, %v287
    %v340 = vpack.c.b16 %v292, %v288
    %v341 = vpack.c.b16 %v297, %v293
    %v342 = vpack.c.b16 %v298, %v294
    %v343 = vpack.c.b16 %v299, %v295
    %v344 = vpack.c.b16 %v300, %v296
    %v345 = vpack.c.b16 %v305, %v301
    %v346 = vpack.c.b16 %v306, %v302
    %v347 = vpack.c.b16 %v307, %v303
    %v348 = vpack.c.b16 %v308, %v304
    %v349 = vpack.c.b16 %v313, %v309
    %v350 = vpack.c.b16 %v314, %v310
    %v351 = vpack.c.b16 %v315, %v311
    %v352 = vpack.c.b16 %v316, %v312
    %v353 = vpack.c.b16 %v321, %v317
    %v354 = vpack.c.b16 %v322, %v318
    %v355 = vpack.c.b16 %v323, %v319
    %v356 = vpack.c.b16 %v324, %v320
    %389 = vmatprep.subr.bf16.mxu0 %v354
    %390 = vmatpush1.bf16.msra.mxu0 %v353
    %391 = vmatprep.subr.bf16.mxu0 %v350
    %392 = vmatpush1.bf16.msra.mxu0 %v349
    %393 = vmatprep.subr.bf16.mxu0 %v346
    %394 = vmatpush1.bf16.msra.mxu0 %v345
    %395 = vmatprep.subr.bf16.mxu0 %v342
    %396 = vmatpush1.bf16.msra.mxu0 %v341
    %397 = vmatprep.subr.bf16.mxu0 %v338
    %398 = vmatpush1.bf16.msra.mxu0 %v337
    %399 = vmatprep.subr.bf16.mxu0 %v334
    %400 = vmatpush1.bf16.msra.mxu0 %v333
    %401 = vmatprep.subr.bf16.mxu0 %v330
    %402 = vmatpush1.bf16.msra.mxu0 %v329
    %403 = vmatprep.subr.bf16.mxu0 %v326
    %404 = vmatpush1.bf16.msra.mxu0 %v325
    %405 = vmatprep.subr.bf16.mxu0 0
    %406 = vmatpush2.bf16.msra.mxu0 0
    %407 = vmatprep.subr.bf16.mxu0 0
    %408 = vmatpush2.bf16.msra.mxu0 0
    %409 = vmatprep.subr.bf16.mxu0 0
    %410 = vmatpush2.bf16.msra.mxu0 0
    %411 = vmatprep.subr.bf16.mxu0 0
    %412 = vmatpush2.bf16.msra.mxu0 0
    %413 = vmatprep.subr.bf16.mxu0 0
    %414 = vmatpush2.bf16.msra.mxu0 0
    %415 = vmatprep.subr.bf16.mxu0 0
    %416 = vmatpush2.bf16.msra.mxu0 0
    %417 = vmatprep.subr.bf16.mxu0 0
    %418 = vmatpush2.bf16.msra.mxu0 0
    %419 = vmatprep.subr.bf16.mxu0 0
    %420 = vmatpush2.bf16.msra.mxu0 0
    %421 = vmatprep.mubr.bf16.mxu0 0
    %422 = vmatmul.mubr.bf16.gmra.mxu0 0
    %v423 = vpop.f32.mrf.mxu0
    %v424 = vadd.f32 0.0, %v423
    %v425 = vpop.f32.mrf.mxu0
    %v426 = vadd.f32 0.0, %v425
    %v427 = vpop.f32.mrf.mxu0
    %v428 = vpop.f32.mrf.mxu0
    %429 = vdwg.mxu0
    %430 = vmatprep.subr.bf16.mxu0 %v356
    %431 = vmatpush1.bf16.msra.mxu0 %v355
    %432 = vmatprep.subr.bf16.mxu0 %v352
    %433 = vmatpush1.bf16.msra.mxu0 %v351
    %434 = vmatprep.subr.bf16.mxu0 %v348
    %435 = vmatpush1.bf16.msra.mxu0 %v347
    %436 = vmatprep.subr.bf16.mxu0 %v344
    %437 = vmatpush1.bf16.msra.mxu0 %v343
    %438 = vmatprep.subr.bf16.mxu0 %v340
    %439 = vmatpush1.bf16.msra.mxu0 %v339
    %440 = vmatprep.subr.bf16.mxu0 %v336
    %441 = vmatpush1.bf16.msra.mxu0 %v335
    %442 = vmatprep.subr.bf16.mxu0 %v332
    %443 = vmatpush1.bf16.msra.mxu0 %v331
    %444 = vmatprep.subr.bf16.mxu0 %v328
    %445 = vmatpush1.bf16.msra.mxu0 %v327
    %446 = vmatprep.subr.bf16.mxu0 0
    %447 = vmatpush2.bf16.msra.mxu0 0
    %448 = vmatprep.subr.bf16.mxu0 0
    %449 = vmatpush2.bf16.msra.mxu0 0
    %450 = vmatprep.subr.bf16.mxu0 0
    %451 = vmatpush2.bf16.msra.mxu0 0
    %452 = vmatprep.subr.bf16.mxu0 0
    %453 = vmatpush2.bf16.msra.mxu0 0
    %454 = vmatprep.subr.bf16.mxu0 0
    %455 = vmatpush2.bf16.msra.mxu0 0
    %456 = vmatprep.subr.bf16.mxu0 0
    %457 = vmatpush2.bf16.msra.mxu0 0
    %458 = vmatprep.subr.bf16.mxu0 0
    %459 = vmatpush2.bf16.msra.mxu0 0
    %460 = vmatprep.subr.bf16.mxu0 0
    %461 = vmatpush2.bf16.msra.mxu0 0
    %462 = vmatprep.mubr.bf16.mxu0 0
    %463 = vmatmul.mubr.bf16.gmra.mxu0 0
    %v464 = vpop.f32.mrf.mxu0
    %v465 = vadd.f32 0.0, %v464
    %v466 = vpop.f32.mrf.mxu0
    %v467 = vadd.f32 0.0, %v466
    %v468 = vpop.f32.mrf.mxu0
    %v469 = vpop.f32.mrf.mxu0
    %470 = vdwg.mxu0
    %v471 = vadd.f32 %v193, %v424
    %v472 = vadd.f32 %v194, %v426
    %v473 = vadd.f32 %v195, %v465
    %v474 = vadd.f32 %v196, %v467
    %v475 = vxor.u32 %v471, 2147483648
    %v476 = vmul.f32 %v475, 1.442695
    %v477 = vpow.pop %v476
    %v478 = vadd.f32 %v477, 1.0
    %v479 = vrcp.pop %v478
    %v480 = vmul.f32 1.0, %v479
    %v481 = vxor.u32 %v472, 2147483648
    %v482 = vmul.f32 %v481, 1.442695
    %v483 = vpow.pop %v482
    %v484 = vadd.f32 %v483, 1.0
    %v485 = vrcp.pop %v484
    %v486 = vmul.f32 1.0, %v485
    %v487 = vtanh.pop %v473
    %v488 = vxor.u32 %v474, 2147483648
    %v489 = vmul.f32 %v488, 1.442695
    %v490 = vpow.pop %v489
    %v491 = vadd.f32 %v490, 1.0
    %v492 = vrcp.pop %v491
    %v493 = vmul.f32 1.0, %v492
    %v494 = vmul.f32 %v486, 0.0
    %v495 = vmul.f32 %v480, %v487
    %v496 = vadd.f32 %v494, %v495
    %v497 = vtanh.pop %v496
    %v498 = vmul.f32 %v493, %v497
    %v499 = vld [vmem:[#allocation2] sm:$0xc]
    %v500 = vld [vmem:[#allocation2 + $0x8] sm:$0xc]
    %v501 = vld [vmem:[#allocation2 + $0x10] sm:$0xc]
    %v502 = vld [vmem:[#allocation2 + $0x18] sm:$0xc]
    %v503 = vpack.c.bf16 %v498, %v498
    %504 = vmatprep.subr.bf16.mxu0 %v354
    %505 = vmatpush1.bf16.msra.mxu0 %v353
    %506 = vmatprep.subr.bf16.mxu0 %v350
    %507 = vmatpush1.bf16.msra.mxu0 %v349
    %508 = vmatprep.subr.bf16.mxu0 %v346
    %509 = vmatpush1.bf16.msra.mxu0 %v345
    %510 = vmatprep.subr.bf16.mxu0 %v342
    %511 = vmatpush1.bf16.msra.mxu0 %v341
    %512 = vmatprep.subr.bf16.mxu0 %v338
    %513 = vmatpush1.bf16.msra.mxu0 %v337
    %514 = vmatprep.subr.bf16.mxu0 %v334
    %515 = vmatpush1.bf16.msra.mxu0 %v333
    %516 = vmatprep.subr.bf16.mxu0 %v330
    %517 = vmatpush1.bf16.msra.mxu0 %v329
    %518 = vmatprep.subr.bf16.mxu0 %v326
    %519 = vmatpush1.bf16.msra.mxu0 %v325
    %520 = vmatprep.subr.bf16.mxu0 0
    %521 = vmatpush2.bf16.msra.mxu0 0
    %522 = vmatprep.subr.bf16.mxu0 0
    %523 = vmatpush2.bf16.msra.mxu0 0
    %524 = vmatprep.subr.bf16.mxu0 0
    %525 = vmatpush2.bf16.msra.mxu0 0
    %526 = vmatprep.subr.bf16.mxu0 0
    %527 = vmatpush2.bf16.msra.mxu0 0
    %528 = vmatprep.subr.bf16.mxu0 0
    %529 = vmatpush2.bf16.msra.mxu0 0
    %530 = vmatprep.subr.bf16.mxu0 0
    %531 = vmatpush2.bf16.msra.mxu0 0
    %532 = vmatprep.subr.bf16.mxu0 0
    %533 = vmatpush2.bf16.msra.mxu0 0
    %534 = vmatprep.subr.bf16.mxu0 0
    %535 = vmatpush2.bf16.msra.mxu0 0
    %536 = vmatprep.mubr.bf16.mxu0 0
    %537 = vmatmul.mubr.bf16.gmra.mxu0 %v503
    %v538 = vpop.f32.mrf.mxu0
    %v539 = vadd.f32 0.0, %v538
    %v540 = vpop.f32.mrf.mxu0
    %v541 = vadd.f32 0.0, %v540
    %v542 = vpop.f32.mrf.mxu0
    %v543 = vpop.f32.mrf.mxu0
    %544 = vdwg.mxu0
    %545 = vmatprep.subr.bf16.mxu0 %v356
    %546 = vmatpush1.bf16.msra.mxu0 %v355
    %547 = vmatprep.subr.bf16.mxu0 %v352
    %548 = vmatpush1.bf16.msra.mxu0 %v351
    %549 = vmatprep.subr.bf16.mxu0 %v348
    %550 = vmatpush1.bf16.msra.mxu0 %v347
    %551 = vmatprep.subr.bf16.mxu0 %v344
    %552 = vmatpush1.bf16.msra.mxu0 %v343
    %553 = vmatprep.subr.bf16.mxu0 %v340
    %554 = vmatpush1.bf16.msra.mxu0 %v339
    %555 = vmatprep.subr.bf16.mxu0 %v336
    %556 = vmatpush1.bf16.msra.mxu0 %v335
    %557 = vmatprep.subr.bf16.mxu0 %v332
    %558 = vmatpush1.bf16.msra.mxu0 %v331
    %559 = vmatprep.subr.bf16.mxu0 %v328
    %560 = vmatpush1.bf16.msra.mxu0 %v327
    %561 = vmatprep.subr.bf16.mxu0 0
    %562 = vmatpush2.bf16.msra.mxu0 0
    %563 = vmatprep.subr.bf16.mxu0 0
    %564 = vmatpush2.bf16.msra.mxu0 0
    %565 = vmatprep.subr.bf16.mxu0 0
    %566 = vmatpush2.bf16.msra.mxu0 0
    %567 = vmatprep.subr.bf16.mxu0 0
    %568 = vmatpush2.bf16.msra.mxu0 0
    %569 = vmatprep.subr.bf16.mxu0 0
    %570 = vmatpush2.bf16.msra.mxu0 0
    %571 = vmatprep.subr.bf16.mxu0 0
    %572 = vmatpush2.bf16.msra.mxu0 0
    %573 = vmatprep.subr.bf16.mxu0 0
    %574 = vmatpush2.bf16.msra.mxu0 0
    %575 = vmatprep.subr.bf16.mxu0 0
    %576 = vmatpush2.bf16.msra.mxu0 0
    %577 = vmatprep.mubr.bf16.mxu0 0
    %578 = vmatmul.mubr.bf16.gmra.mxu0 %v503
    %v579 = vpop.f32.mrf.mxu0
    %v580 = vadd.f32 0.0, %v579
    %v581 = vpop.f32.mrf.mxu0
    %v582 = vadd.f32 0.0, %v581
    %v583 = vpop.f32.mrf.mxu0
    %v584 = vpop.f32.mrf.mxu0
    %585 = vdwg.mxu0
    %v590 = vrot.slane %v539, 6
    %v591 = vrot.slane %v541, 6
    %v592 = vrot.slane %v580, 6
    %v593 = vrot.slane %v582, 6
    %v598 = vadd.f32 %v499, %v590
    %v599 = vadd.f32 %v500, %v591
    %v600 = vadd.f32 %v501, %v592
    %v601 = vadd.f32 %v502, %v593
    %v602 = vxor.u32 %v598, 2147483648
    %v603 = vmul.f32 %v602, 1.442695
    %v604 = vpow.pop %v603
    %v605 = vadd.f32 %v604, 1.0
    %v606 = vrcp.pop %v605
    %v607 = vmul.f32 1.0, %v606
    %v608 = vxor.u32 %v599, 2147483648
    %v609 = vmul.f32 %v608, 1.442695
    %v610 = vpow.pop %v609
    %v611 = vadd.f32 %v610, 1.0
    %v612 = vrcp.pop %v611
    %v613 = vmul.f32 1.0, %v612
    %v614 = vtanh.pop %v600
    %v615 = vxor.u32 %v601, 2147483648
    %v616 = vmul.f32 %v615, 1.442695
    %v617 = vpow.pop %v616
    %v618 = vadd.f32 %v617, 1.0
    %v619 = vrcp.pop %v618
    %v620 = vmul.f32 1.0, %v619
    %v622 = vrot.slane %v496, 6
    %v624 = vmul.f32 %v613, %v622
    %v625 = vmul.f32 %v607, %v614
    %v626 = vadd.f32 %v624, %v625
    %v627 = vtanh.pop %v626
    %v628 = vmul.f32 %v620, %v627
    %v629 = vld [vmem:[#allocation2] sm:$0x30]
    %v630 = vld [vmem:[#allocation2 + $0x8] sm:$0x30]
    %v631 = vld [vmem:[#allocation2 + $0x10] sm:$0x30]
    %v632 = vld [vmem:[#allocation2 + $0x18] sm:$0x30]
    %v633 = vpack.c.bf16 %v628, %v628
    %v635 = vrot.slane %v633, 1
    %637 = vmatprep.subr.bf16.mxu0 %v354
    %638 = vmatpush1.bf16.msra.mxu0 %v353
    %639 = vmatprep.subr.bf16.mxu0 %v350
    %640 = vmatpush1.bf16.msra.mxu0 %v349
    %641 = vmatprep.subr.bf16.mxu0 %v346
    %642 = vmatpush1.bf16.msra.mxu0 %v345
    %643 = vmatprep.subr.bf16.mxu0 %v342
    %644 = vmatpush1.bf16.msra.mxu0 %v341
    %645 = vmatprep.subr.bf16.mxu0 %v338
    %646 = vmatpush1.bf16.msra.mxu0 %v337
    %647 = vmatprep.subr.bf16.mxu0 %v334
    %648 = vmatpush1.bf16.msra.mxu0 %v333
    %649 = vmatprep.subr.bf16.mxu0 %v330
    %650 = vmatpush1.bf16.msra.mxu0 %v329
    %651 = vmatprep.subr.bf16.mxu0 %v326
    %652 = vmatpush1.bf16.msra.mxu0 %v325
    %653 = vmatprep.subr.bf16.mxu0 0
    %654 = vmatpush2.bf16.msra.mxu0 0
    %655 = vmatprep.subr.bf16.mxu0 0
    %656 = vmatpush2.bf16.msra.mxu0 0
    %657 = vmatprep.subr.bf16.mxu0 0
    %658 = vmatpush2.bf16.msra.mxu0 0
    %659 = vmatprep.subr.bf16.mxu0 0
    %660 = vmatpush2.bf16.msra.mxu0 0
    %661 = vmatprep.subr.bf16.mxu0 0
    %662 = vmatpush2.bf16.msra.mxu0 0
    %663 = vmatprep.subr.bf16.mxu0 0
    %664 = vmatpush2.bf16.msra.mxu0 0
    %665 = vmatprep.subr.bf16.mxu0 0
    %666 = vmatpush2.bf16.msra.mxu0 0
    %667 = vmatprep.subr.bf16.mxu0 0
    %668 = vmatpush2.bf16.msra.mxu0 0
    %669 = vmatprep.mubr.bf16.mxu0 0
    %670 = vmatmul.mubr.bf16.gmra.mxu0 %v635
    %v671 = vpop.f32.mrf.mxu0
    %v672 = vadd.f32 0.0, %v671
    %v673 = vpop.f32.mrf.mxu0
    %v674 = vadd.f32 0.0, %v673
    %v675 = vpop.f32.mrf.mxu0
    %v676 = vpop.f32.mrf.mxu0
    %677 = vdwg.mxu0
    %678 = vmatprep.subr.bf16.mxu0 %v356
    %679 = vmatpush1.bf16.msra.mxu0 %v355
    %680 = vmatprep.subr.bf16.mxu0 %v352
    %681 = vmatpush1.bf16.msra.mxu0 %v351
    %682 = vmatprep.subr.bf16.mxu0 %v348
    %683 = vmatpush1.bf16.msra.mxu0 %v347
    %684 = vmatprep.subr.bf16.mxu0 %v344
    %685 = vmatpush1.bf16.msra.mxu0 %v343
    %686 = vmatprep.subr.bf16.mxu0 %v340
    %687 = vmatpush1.bf16.msra.mxu0 %v339
    %688 = vmatprep.subr.bf16.mxu0 %v336
    %689 = vmatpush1.bf16.msra.mxu0 %v335
    %690 = vmatprep.subr.bf16.mxu0 %v332
    %691 = vmatpush1.bf16.msra.mxu0 %v331
    %692 = vmatprep.subr.bf16.mxu0 %v328
    %693 = vmatpush1.bf16.msra.mxu0 %v327
    %694 = vmatprep.subr.bf16.mxu0 0
    %695 = vmatpush2.bf16.msra.mxu0 0
    %696 = vmatprep.subr.bf16.mxu0 0
    %697 = vmatpush2.bf16.msra.mxu0 0
    %698 = vmatprep.subr.bf16.mxu0 0
    %699 = vmatpush2.bf16.msra.mxu0 0
    %700 = vmatprep.subr.bf16.mxu0 0
    %701 = vmatpush2.bf16.msra.mxu0 0
    %702 = vmatprep.subr.bf16.mxu0 0
    %703 = vmatpush2.bf16.msra.mxu0 0
    %704 = vmatprep.subr.bf16.mxu0 0
    %705 = vmatpush2.bf16.msra.mxu0 0
    %706 = vmatprep.subr.bf16.mxu0 0
    %707 = vmatpush2.bf16.msra.mxu0 0
    %708 = vmatprep.subr.bf16.mxu0 0
    %709 = vmatpush2.bf16.msra.mxu0 0
    %710 = vmatprep.mubr.bf16.mxu0 0
    %711 = vmatmul.mubr.bf16.gmra.mxu0 %v635
    %v712 = vpop.f32.mrf.mxu0
    %v713 = vadd.f32 0.0, %v712
    %v714 = vpop.f32.mrf.mxu0
    %v715 = vadd.f32 0.0, %v714
    %v716 = vpop.f32.mrf.mxu0
    %v717 = vpop.f32.mrf.mxu0
    %718 = vdwg.mxu0
    %v723 = vrot.slane %v672, 4
    %v724 = vrot.slane %v674, 4
    %v725 = vrot.slane %v713, 4
    %v726 = vrot.slane %v715, 4
    %v731 = vadd.f32 %v629, %v723
    %v732 = vadd.f32 %v630, %v724
    %v733 = vadd.f32 %v631, %v725
    %v734 = vadd.f32 %v632, %v726
    %v735 = vxor.u32 %v731, 2147483648
    %v736 = vmul.f32 %v735, 1.442695
    %v737 = vpow.pop %v736
    %v738 = vadd.f32 %v737, 1.0
    %v739 = vrcp.pop %v738
    %v740 = vmul.f32 1.0, %v739
    %v741 = vxor.u32 %v732, 2147483648
    %v742 = vmul.f32 %v741, 1.442695
    %v743 = vpow.pop %v742
    %v744 = vadd.f32 %v743, 1.0
    %v745 = vrcp.pop %v744
    %v746 = vmul.f32 1.0, %v745
    %v747 = vtanh.pop %v733
    %v748 = vxor.u32 %v734, 2147483648
    %v749 = vmul.f32 %v748, 1.442695
    %v750 = vpow.pop %v749
    %v751 = vadd.f32 %v750, 1.0
    %v752 = vrcp.pop %v751
    %v753 = vmul.f32 1.0, %v752
    %v755 = vrot.slane %v626, 6
    %v757 = vmul.f32 %v746, %v755
    %v758 = vmul.f32 %v740, %v747
    %v759 = vadd.f32 %v757, %v758
    %v760 = vtanh.pop %v759
    %v761 = vmul.f32 %v753, %v760
    %v762 = vld [vmem:[#allocation2] sm:$0xc0]
    %v763 = vld [vmem:[#allocation2 + $0x8] sm:$0xc0]
    %v764 = vld [vmem:[#allocation2 + $0x10] sm:$0xc0]
    %v765 = vld [vmem:[#allocation2 + $0x18] sm:$0xc0]
    %v766 = vpack.c.bf16 %v761, %v761
    %v768 = vrot.slane %v766, 2
    %770 = vmatprep.subr.bf16.mxu0 %v354
    %771 = vmatpush1.bf16.msra.mxu0 %v353
    %772 = vmatprep.subr.bf16.mxu0 %v350
    %773 = vmatpush1.bf16.msra.mxu0 %v349
    %774 = vmatprep.subr.bf16.mxu0 %v346
    %775 = vmatpush1.bf16.msra.mxu0 %v345
    %776 = vmatprep.subr.bf16.mxu0 %v342
    %777 = vmatpush1.bf16.msra.mxu0 %v341
    %778 = vmatprep.subr.bf16.mxu0 %v338
    %779 = vmatpush1.bf16.msra.mxu0 %v337
    %780 = vmatprep.subr.bf16.mxu0 %v334
    %781 = vmatpush1.bf16.msra.mxu0 %v333
    %782 = vmatprep.subr.bf16.mxu0 %v330
    %783 = vmatpush1.bf16.msra.mxu0 %v329
    %784 = vmatprep.subr.bf16.mxu0 %v326
    %785 = vmatpush1.bf16.msra.mxu0 %v325
    %786 = vmatprep.subr.bf16.mxu0 0
    %787 = vmatpush2.bf16.msra.mxu0 0
    %788 = vmatprep.subr.bf16.mxu0 0
    %789 = vmatpush2.bf16.msra.mxu0 0
    %790 = vmatprep.subr.bf16.mxu0 0
    %791 = vmatpush2.bf16.msra.mxu0 0
    %792 = vmatprep.subr.bf16.mxu0 0
    %793 = vmatpush2.bf16.msra.mxu0 0
    %794 = vmatprep.subr.bf16.mxu0 0
    %795 = vmatpush2.bf16.msra.mxu0 0
    %796 = vmatprep.subr.bf16.mxu0 0
    %797 = vmatpush2.bf16.msra.mxu0 0
    %798 = vmatprep.subr.bf16.mxu0 0
    %799 = vmatpush2.bf16.msra.mxu0 0
    %800 = vmatprep.subr.bf16.mxu0 0
    %801 = vmatpush2.bf16.msra.mxu0 0
    %802 = vmatprep.mubr.bf16.mxu0 0
    %803 = vmatmul.mubr.bf16.gmra.mxu0 %v768
    %v804 = vpop.f32.mrf.mxu0
    %v805 = vadd.f32 0.0, %v804
    %v806 = vpop.f32.mrf.mxu0
    %v807 = vadd.f32 0.0, %v806
    %v808 = vpop.f32.mrf.mxu0
    %v809 = vpop.f32.mrf.mxu0
    %810 = vdwg.mxu0
    %811 = vmatprep.subr.bf16.mxu0 %v356
    %812 = vmatpush1.bf16.msra.mxu0 %v355
    %813 = vmatprep.subr.bf16.mxu0 %v352
    %814 = vmatpush1.bf16.msra.mxu0 %v351
    %815 = vmatprep.subr.bf16.mxu0 %v348
    %816 = vmatpush1.bf16.msra.mxu0 %v347
    %817 = vmatprep.subr.bf16.mxu0 %v344
    %818 = vmatpush1.bf16.msra.mxu0 %v343
    %819 = vmatprep.subr.bf16.mxu0 %v340
    %820 = vmatpush1.bf16.msra.mxu0 %v339
    %821 = vmatprep.subr.bf16.mxu0 %v336
    %822 = vmatpush1.bf16.msra.mxu0 %v335
    %823 = vmatprep.subr.bf16.mxu0 %v332
    %824 = vmatpush1.bf16.msra.mxu0 %v331
    %825 = vmatprep.subr.bf16.mxu0 %v328
    %826 = vmatpush1.bf16.msra.mxu0 %v327
    %827 = vmatprep.subr.bf16.mxu0 0
    %828 = vmatpush2.bf16.msra.mxu0 0
    %829 = vmatprep.subr.bf16.mxu0 0
    %830 = vmatpush2.bf16.msra.mxu0 0
    %831 = vmatprep.subr.bf16.mxu0 0
    %832 = vmatpush2.bf16.msra.mxu0 0
    %833 = vmatprep.subr.bf16.mxu0 0
    %834 = vmatpush2.bf16.msra.mxu0 0
    %835 = vmatprep.subr.bf16.mxu0 0
    %836 = vmatpush2.bf16.msra.mxu0 0
    %837 = vmatprep.subr.bf16.mxu0 0
    %838 = vmatpush2.bf16.msra.mxu0 0
    %839 = vmatprep.subr.bf16.mxu0 0
    %840 = vmatpush2.bf16.msra.mxu0 0
    %841 = vmatprep.subr.bf16.mxu0 0
    %842 = vmatpush2.bf16.msra.mxu0 0
    %843 = vmatprep.mubr.bf16.mxu0 0
    %844 = vmatmul.mubr.bf16.gmra.mxu0 %v768
    %v845 = vpop.f32.mrf.mxu0
    %v846 = vadd.f32 0.0, %v845
    %v847 = vpop.f32.mrf.mxu0
    %v848 = vadd.f32 0.0, %v847
    %v849 = vpop.f32.mrf.mxu0
    %v850 = vpop.f32.mrf.mxu0
    %851 = vdwg.mxu0
    %v856 = vrot.slane %v805, 2
    %v857 = vrot.slane %v807, 2
    %v858 = vrot.slane %v846, 2
    %v859 = vrot.slane %v848, 2
    %v864 = vadd.f32 %v762, %v856
    %v865 = vadd.f32 %v763, %v857
    %v866 = vadd.f32 %v764, %v858
    %v867 = vadd.f32 %v765, %v859
    %v868 = vxor.u32 %v864, 2147483648
    %v869 = vmul.f32 %v868, 1.442695
    %v870 = vpow.pop %v869
    %v871 = vadd.f32 %v870, 1.0
    %v872 = vrcp.pop %v871
    %v873 = vmul.f32 1.0, %v872
    %v874 = vxor.u32 %v865, 2147483648
    %v875 = vmul.f32 %v874, 1.442695
    %v876 = vpow.pop %v875
    %v877 = vadd.f32 %v876, 1.0
    %v878 = vrcp.pop %v877
    %v879 = vmul.f32 1.0, %v878
    %v880 = vtanh.pop %v866
    %v881 = vxor.u32 %v867, 2147483648
    %v882 = vmul.f32 %v881, 1.442695
    %v883 = vpow.pop %v882
    %v884 = vadd.f32 %v883, 1.0
    %v885 = vrcp.pop %v884
    %v886 = vmul.f32 1.0, %v885
    %v888 = vrot.slane %v759, 6
    %v890 = vmul.f32 %v879, %v888
    %v891 = vmul.f32 %v873, %v880
    %v892 = vadd.f32 %v890, %v891
    %v893 = vtanh.pop %v892
    %v894 = vmul.f32 %v886, %v893
    %v895 = vld [vmem:[#allocation2 + $0x20] sm:$0x3]
    %v896 = vld [vmem:[#allocation2 + $0x28] sm:$0x3]
    %v897 = vld [vmem:[#allocation2 + $0x30] sm:$0x3]
    %v898 = vld [vmem:[#allocation2 + $0x38] sm:$0x3]
    %v899 = vpack.c.bf16 %v894, %v894
    %v901 = vrot.slane %v899, 3
    %903 = vmatprep.subr.bf16.mxu0 %v354
    %904 = vmatpush1.bf16.msra.mxu0 %v353
    %905 = vmatprep.subr.bf16.mxu0 %v350
    %906 = vmatpush1.bf16.msra.mxu0 %v349
    %907 = vmatprep.subr.bf16.mxu0 %v346
    %908 = vmatpush1.bf16.msra.mxu0 %v345
    %909 = vmatprep.subr.bf16.mxu0 %v342
    %910 = vmatpush1.bf16.msra.mxu0 %v341
    %911 = vmatprep.subr.bf16.mxu0 %v338
    %912 = vmatpush1.bf16.msra.mxu0 %v337
    %913 = vmatprep.subr.bf16.mxu0 %v334
    %914 = vmatpush1.bf16.msra.mxu0 %v333
    %915 = vmatprep.subr.bf16.mxu0 %v330
    %916 = vmatpush1.bf16.msra.mxu0 %v329
    %917 = vmatprep.subr.bf16.mxu0 %v326
    %918 = vmatpush1.bf16.msra.mxu0 %v325
    %919 = vmatprep.subr.bf16.mxu0 0
    %920 = vmatpush2.bf16.msra.mxu0 0
    %921 = vmatprep.subr.bf16.mxu0 0
    %922 = vmatpush2.bf16.msra.mxu0 0
    %923 = vmatprep.subr.bf16.mxu0 0
    %924 = vmatpush2.bf16.msra.mxu0 0
    %925 = vmatprep.subr.bf16.mxu0 0
    %926 = vmatpush2.bf16.msra.mxu0 0
    %927 = vmatprep.subr.bf16.mxu0 0
    %928 = vmatpush2.bf16.msra.mxu0 0
    %929 = vmatprep.subr.bf16.mxu0 0
    %930 = vmatpush2.bf16.msra.mxu0 0
    %931 = vmatprep.subr.bf16.mxu0 0
    %932 = vmatpush2.bf16.msra.mxu0 0
    %933 = vmatprep.subr.bf16.mxu0 0
    %934 = vmatpush2.bf16.msra.mxu0 0
    %935 = vmatprep.mubr.bf16.mxu0 0
    %936 = vmatmul.mubr.bf16.gmra.mxu0 %v901
    %v937 = vpop.f32.mrf.mxu0
    %v938 = vadd.f32 0.0, %v937
    %v939 = vpop.f32.mrf.mxu0
    %v940 = vadd.f32 0.0, %v939
    %v941 = vpop.f32.mrf.mxu0
    %v942 = vpop.f32.mrf.mxu0
    %943 = vdwg.mxu0
    %944 = vmatprep.subr.bf16.mxu0 %v356
    %945 = vmatpush1.bf16.msra.mxu0 %v355
    %946 = vmatprep.subr.bf16.mxu0 %v352
    %947 = vmatpush1.bf16.msra.mxu0 %v351
    %948 = vmatprep.subr.bf16.mxu0 %v348
    %949 = vmatpush1.bf16.msra.mxu0 %v347
    %950 = vmatprep.subr.bf16.mxu0 %v344
    %951 = vmatpush1.bf16.msra.mxu0 %v343
    %952 = vmatprep.subr.bf16.mxu0 %v340
    %953 = vmatpush1.bf16.msra.mxu0 %v339
    %954 = vmatprep.subr.bf16.mxu0 %v336
    %955 = vmatpush1.bf16.msra.mxu0 %v335
    %956 = vmatprep.subr.bf16.mxu0 %v332
    %957 = vmatpush1.bf16.msra.mxu0 %v331
    %958 = vmatprep.subr.bf16.mxu0 %v328
    %959 = vmatpush1.bf16.msra.mxu0 %v327
    %960 = vmatprep.subr.bf16.mxu0 0
    %961 = vmatpush2.bf16.msra.mxu0 0
    %962 = vmatprep.subr.bf16.mxu0 0
    %963 = vmatpush2.bf16.msra.mxu0 0
    %964 = vmatprep.subr.bf16.mxu0 0
    %965 = vmatpush2.bf16.msra.mxu0 0
    %966 = vmatprep.subr.bf16.mxu0 0
    %967 = vmatpush2.bf16.msra.mxu0 0
    %968 = vmatprep.subr.bf16.mxu0 0
    %969 = vmatpush2.bf16.msra.mxu0 0
    %970 = vmatprep.subr.bf16.mxu0 0
    %971 = vmatpush2.bf16.msra.mxu0 0
    %972 = vmatprep.subr.bf16.mxu0 0
    %973 = vmatpush2.bf16.msra.mxu0 0
    %974 = vmatprep.subr.bf16.mxu0 0
    %975 = vmatpush2.bf16.msra.mxu0 0
    %976 = vmatprep.mubr.bf16.mxu0 0
    %977 = vmatmul.mubr.bf16.gmra.mxu0 %v901
    %v978 = vpop.f32.mrf.mxu0
    %v979 = vadd.f32 0.0, %v978
    %v980 = vpop.f32.mrf.mxu0
    %v981 = vadd.f32 0.0, %v980
    %v982 = vpop.f32.mrf.mxu0
    %v983 = vpop.f32.mrf.mxu0
    %984 = vdwg.mxu0
    %v985 = vadd.f32 %v895, %v938
    %v986 = vadd.f32 %v896, %v940
    %v987 = vadd.f32 %v897, %v979
    %v988 = vadd.f32 %v898, %v981
    %v989 = vxor.u32 %v985, 2147483648
    %v990 = vmul.f32 %v989, 1.442695
    %v991 = vpow.pop %v990
    %v992 = vadd.f32 %v991, 1.0
    %v993 = vrcp.pop %v992
    %v994 = vmul.f32 1.0, %v993
    %v995 = vxor.u32 %v986, 2147483648
    %v996 = vmul.f32 %v995, 1.442695
    %v997 = vpow.pop %v996
    %v998 = vadd.f32 %v997, 1.0
    %v999 = vrcp.pop %v998
    %v1000 = vmul.f32 1.0, %v999
    %v1001 = vtanh.pop %v987
    %v1002 = vxor.u32 %v988, 2147483648
    %v1003 = vmul.f32 %v1002, 1.442695
    %v1004 = vpow.pop %v1003
    %v1005 = vadd.f32 %v1004, 1.0
    %v1006 = vrcp.pop %v1005
    %v1007 = vmul.f32 1.0, %v1006
    %v1009 = vrot.slane %v892, 6
    %v1011 = vmul.f32 %v1000, %v1009
    %v1012 = vmul.f32 %v994, %v1001
    %v1013 = vadd.f32 %v1011, %v1012
    %v1014 = vtanh.pop %v1013
    %v1015 = vmul.f32 %v1007, %v1014
    %v1016 = vld [vmem:[#allocation2 + $0x20] sm:$0xc]
    %v1017 = vld [vmem:[#allocation2 + $0x28] sm:$0xc]
    %v1018 = vld [vmem:[#allocation2 + $0x30] sm:$0xc]
    %v1019 = vld [vmem:[#allocation2 + $0x38] sm:$0xc]
    %v1020 = vpack.c.bf16 %v1015, %v1015
    %1021 = vmatprep.subr.bf16.mxu0 %v354
    %1022 = vmatpush1.bf16.msra.mxu0 %v353
    %1023 = vmatprep.subr.bf16.mxu0 %v350
    %1024 = vmatpush1.bf16.msra.mxu0 %v349
    %1025 = vmatprep.subr.bf16.mxu0 %v346
    %1026 = vmatpush1.bf16.msra.mxu0 %v345
    %1027 = vmatprep.subr.bf16.mxu0 %v342
    %1028 = vmatpush1.bf16.msra.mxu0 %v341
    %1029 = vmatprep.subr.bf16.mxu0 %v338
    %1030 = vmatpush1.bf16.msra.mxu0 %v337
    %1031 = vmatprep.subr.bf16.mxu0 %v334
    %1032 = vmatpush1.bf16.msra.mxu0 %v333
    %1033 = vmatprep.subr.bf16.mxu0 %v330
    %1034 = vmatpush1.bf16.msra.mxu0 %v329
    %1035 = vmatprep.subr.bf16.mxu0 %v326
    %1036 = vmatpush1.bf16.msra.mxu0 %v325
    %1037 = vmatprep.subr.bf16.mxu0 0
    %1038 = vmatpush2.bf16.msra.mxu0 0
    %1039 = vmatprep.subr.bf16.mxu0 0
    %1040 = vmatpush2.bf16.msra.mxu0 0
    %1041 = vmatprep.subr.bf16.mxu0 0
    %1042 = vmatpush2.bf16.msra.mxu0 0
    %1043 = vmatprep.subr.bf16.mxu0 0
    %1044 = vmatpush2.bf16.msra.mxu0 0
    %1045 = vmatprep.subr.bf16.mxu0 0
    %1046 = vmatpush2.bf16.msra.mxu0 0
    %1047 = vmatprep.subr.bf16.mxu0 0
    %1048 = vmatpush2.bf16.msra.mxu0 0
    %1049 = vmatprep.subr.bf16.mxu0 0
    %1050 = vmatpush2.bf16.msra.mxu0 0
    %1051 = vmatprep.subr.bf16.mxu0 0
    %1052 = vmatpush2.bf16.msra.mxu0 0
    %1053 = vmatprep.mubr.bf16.mxu0 0
    %1054 = vmatmul.mubr.bf16.gmra.mxu0 %v1020
    %v1055 = vpop.f32.mrf.mxu0
    %v1056 = vadd.f32 0.0, %v1055
    %v1057 = vpop.f32.mrf.mxu0
    %v1058 = vadd.f32 0.0, %v1057
    %v1059 = vpop.f32.mrf.mxu0
    %v1060 = vpop.f32.mrf.mxu0
    %1061 = vdwg.mxu0
    %1062 = vmatprep.subr.bf16.mxu0 %v356
    %1063 = vmatpush1.bf16.msra.mxu0 %v355
    %1064 = vmatprep.subr.bf16.mxu0 %v352
    %1065 = vmatpush1.bf16.msra.mxu0 %v351
    %1066 = vmatprep.subr.bf16.mxu0 %v348
    %1067 = vmatpush1.bf16.msra.mxu0 %v347
    %1068 = vmatprep.subr.bf16.mxu0 %v344
    %1069 = vmatpush1.bf16.msra.mxu0 %v343
    %1070 = vmatprep.subr.bf16.mxu0 %v340
    %1071 = vmatpush1.bf16.msra.mxu0 %v339
    %1072 = vmatprep.subr.bf16.mxu0 %v336
    %1073 = vmatpush1.bf16.msra.mxu0 %v335
    %1074 = vmatprep.subr.bf16.mxu0 %v332
    %1075 = vmatpush1.bf16.msra.mxu0 %v331
    %1076 = vmatprep.subr.bf16.mxu0 %v328
    %1077 = vmatpush1.bf16.msra.mxu0 %v327
    %1078 = vmatprep.subr.bf16.mxu0 0
    %1079 = vmatpush2.bf16.msra.mxu0 0
    %1080 = vmatprep.subr.bf16.mxu0 0
    %1081 = vmatpush2.bf16.msra.mxu0 0
    %1082 = vmatprep.subr.bf16.mxu0 0
    %1083 = vmatpush2.bf16.msra.mxu0 0
    %1084 = vmatprep.subr.bf16.mxu0 0
    %1085 = vmatpush2.bf16.msra.mxu0 0
    %1086 = vmatprep.subr.bf16.mxu0 0
    %1087 = vmatpush2.bf16.msra.mxu0 0
    %1088 = vmatprep.subr.bf16.mxu0 0
    %1089 = vmatpush2.bf16.msra.mxu0 0
    %1090 = vmatprep.subr.bf16.mxu0 0
    %1091 = vmatpush2.bf16.msra.mxu0 0
    %1092 = vmatprep.subr.bf16.mxu0 0
    %1093 = vmatpush2.bf16.msra.mxu0 0
    %1094 = vmatprep.mubr.bf16.mxu0 0
    %1095 = vmatmul.mubr.bf16.gmra.mxu0 %v1020
    %v1096 = vpop.f32.mrf.mxu0
    %v1097 = vadd.f32 0.0, %v1096
    %v1098 = vpop.f32.mrf.mxu0
    %v1099 = vadd.f32 0.0, %v1098
    %v1100 = vpop.f32.mrf.mxu0
    %v1101 = vpop.f32.mrf.mxu0
    %1102 = vdwg.mxu0
    %v1107 = vrot.slane %v1056, 6
    %v1108 = vrot.slane %v1058, 6
    %v1109 = vrot.slane %v1097, 6
    %v1110 = vrot.slane %v1099, 6
    %v1115 = vadd.f32 %v1016, %v1107
    %v1116 = vadd.f32 %v1017, %v1108
    %v1117 = vadd.f32 %v1018, %v1109
    %v1118 = vadd.f32 %v1019, %v1110
    %v1119 = vxor.u32 %v1115, 2147483648
    %v1120 = vmul.f32 %v1119, 1.442695
    %v1121 = vpow.pop %v1120
    %v1122 = vadd.f32 %v1121, 1.0
    %v1123 = vrcp.pop %v1122
    %v1124 = vmul.f32 1.0, %v1123
    %v1125 = vxor.u32 %v1116, 2147483648
    %v1126 = vmul.f32 %v1125, 1.442695
    %v1127 = vpow.pop %v1126
    %v1128 = vadd.f32 %v1127, 1.0
    %v1129 = vrcp.pop %v1128
    %v1130 = vmul.f32 1.0, %v1129
    %v1131 = vtanh.pop %v1117
    %v1132 = vxor.u32 %v1118, 2147483648
    %v1133 = vmul.f32 %v1132, 1.442695
    %v1134 = vpow.pop %v1133
    %v1135 = vadd.f32 %v1134, 1.0
    %v1136 = vrcp.pop %v1135
    %v1137 = vmul.f32 1.0, %v1136
    %v1139 = vrot.slane %v1013, 6
    %v1141 = vmul.f32 %v1130, %v1139
    %v1142 = vmul.f32 %v1124, %v1131
    %v1143 = vadd.f32 %v1141, %v1142
    %v1144 = vtanh.pop %v1143
    %v1145 = vmul.f32 %v1137, %v1144
    %v1146 = vld [vmem:[#allocation2 + $0x20] sm:$0x30]
    %v1147 = vld [vmem:[#allocation2 + $0x28] sm:$0x30]
    %v1148 = vld [vmem:[#allocation2 + $0x30] sm:$0x30]
    %v1149 = vld [vmem:[#allocation2 + $0x38] sm:$0x30]
    %v1150 = vpack.c.bf16 %v1145, %v1145
    %v1152 = vrot.slane %v1150, 1
    %1154 = vmatprep.subr.bf16.mxu0 %v354
    %1155 = vmatpush1.bf16.msra.mxu0 %v353
    %1156 = vmatprep.subr.bf16.mxu0 %v350
    %1157 = vmatpush1.bf16.msra.mxu0 %v349
    %1158 = vmatprep.subr.bf16.mxu0 %v346
    %1159 = vmatpush1.bf16.msra.mxu0 %v345
    %1160 = vmatprep.subr.bf16.mxu0 %v342
    %1161 = vmatpush1.bf16.msra.mxu0 %v341
    %1162 = vmatprep.subr.bf16.mxu0 %v338
    %1163 = vmatpush1.bf16.msra.mxu0 %v337
    %1164 = vmatprep.subr.bf16.mxu0 %v334
    %1165 = vmatpush1.bf16.msra.mxu0 %v333
    %1166 = vmatprep.subr.bf16.mxu0 %v330
    %1167 = vmatpush1.bf16.msra.mxu0 %v329
    %1168 = vmatprep.subr.bf16.mxu0 %v326
    %1169 = vmatpush1.bf16.msra.mxu0 %v325
    %1170 = vmatprep.subr.bf16.mxu0 0
    %1171 = vmatpush2.bf16.msra.mxu0 0
    %1172 = vmatprep.subr.bf16.mxu0 0
    %1173 = vmatpush2.bf16.msra.mxu0 0
    %1174 = vmatprep.subr.bf16.mxu0 0
    %1175 = vmatpush2.bf16.msra.mxu0 0
    %1176 = vmatprep.subr.bf16.mxu0 0
    %1177 = vmatpush2.bf16.msra.mxu0 0
    %1178 = vmatprep.subr.bf16.mxu0 0
    %1179 = vmatpush2.bf16.msra.mxu0 0
    %1180 = vmatprep.subr.bf16.mxu0 0
    %1181 = vmatpush2.bf16.msra.mxu0 0
    %1182 = vmatprep.subr.bf16.mxu0 0
    %1183 = vmatpush2.bf16.msra.mxu0 0
    %1184 = vmatprep.subr.bf16.mxu0 0
    %1185 = vmatpush2.bf16.msra.mxu0 0
    %1186 = vmatprep.mubr.bf16.mxu0 0
    %1187 = vmatmul.mubr.bf16.gmra.mxu0 %v1152
    %v1188 = vpop.f32.mrf.mxu0
    %v1189 = vadd.f32 0.0, %v1188
    %v1190 = vpop.f32.mrf.mxu0
    %v1191 = vadd.f32 0.0, %v1190
    %v1192 = vpop.f32.mrf.mxu0
    %v1193 = vpop.f32.mrf.mxu0
    %1194 = vdwg.mxu0
    %1195 = vmatprep.subr.bf16.mxu0 %v356
    %1196 = vmatpush1.bf16.msra.mxu0 %v355
    %1197 = vmatprep.subr.bf16.mxu0 %v352
    %1198 = vmatpush1.bf16.msra.mxu0 %v351
    %1199 = vmatprep.subr.bf16.mxu0 %v348
    %1200 = vmatpush1.bf16.msra.mxu0 %v347
    %1201 = vmatprep.subr.bf16.mxu0 %v344
    %1202 = vmatpush1.bf16.msra.mxu0 %v343
    %1203 = vmatprep.subr.bf16.mxu0 %v340
    %1204 = vmatpush1.bf16.msra.mxu0 %v339
    %1205 = vmatprep.subr.bf16.mxu0 %v336
    %1206 = vmatpush1.bf16.msra.mxu0 %v335
    %1207 = vmatprep.subr.bf16.mxu0 %v332
    %1208 = vmatpush1.bf16.msra.mxu0 %v331
    %1209 = vmatprep.subr.bf16.mxu0 %v328
    %1210 = vmatpush1.bf16.msra.mxu0 %v327
    %1211 = vmatprep.subr.bf16.mxu0 0
    %1212 = vmatpush2.bf16.msra.mxu0 0
    %1213 = vmatprep.subr.bf16.mxu0 0
    %1214 = vmatpush2.bf16.msra.mxu0 0
    %1215 = vmatprep.subr.bf16.mxu0 0
    %1216 = vmatpush2.bf16.msra.mxu0 0
    %1217 = vmatprep.subr.bf16.mxu0 0
    %1218 = vmatpush2.bf16.msra.mxu0 0
    %1219 = vmatprep.subr.bf16.mxu0 0
    %1220 = vmatpush2.bf16.msra.mxu0 0
    %1221 = vmatprep.subr.bf16.mxu0 0
    %1222 = vmatpush2.bf16.msra.mxu0 0
    %1223 = vmatprep.subr.bf16.mxu0 0
    %1224 = vmatpush2.bf16.msra.mxu0 0
    %1225 = vmatprep.subr.bf16.mxu0 0
    %1226 = vmatpush2.bf16.msra.mxu0 0
    %1227 = vmatprep.mubr.bf16.mxu0 0
    %1228 = vmatmul.mubr.bf16.gmra.mxu0 %v1152
    %v1229 = vpop.f32.mrf.mxu0
    %v1230 = vadd.f32 0.0, %v1229
    %v1231 = vpop.f32.mrf.mxu0
    %v1232 = vadd.f32 0.0, %v1231
    %v1233 = vpop.f32.mrf.mxu0
    %v1234 = vpop.f32.mrf.mxu0
    %1235 = vdwg.mxu0
    %v1240 = vrot.slane %v1189, 4
    %v1241 = vrot.slane %v1191, 4
    %v1242 = vrot.slane %v1230, 4
    %v1243 = vrot.slane %v1232, 4
    %v1248 = vadd.f32 %v1146, %v1240
    %v1249 = vadd.f32 %v1147, %v1241
    %v1250 = vadd.f32 %v1148, %v1242
    %v1251 = vadd.f32 %v1149, %v1243
    %v1252 = vxor.u32 %v1248, 2147483648
    %v1253 = vmul.f32 %v1252, 1.442695
    %v1254 = vpow.pop %v1253
    %v1255 = vadd.f32 %v1254, 1.0
    %v1256 = vrcp.pop %v1255
    %v1257 = vmul.f32 1.0, %v1256
    %v1258 = vxor.u32 %v1249, 2147483648
    %v1259 = vmul.f32 %v1258, 1.442695
    %v1260 = vpow.pop %v1259
    %v1261 = vadd.f32 %v1260, 1.0
    %v1262 = vrcp.pop %v1261
    %v1263 = vmul.f32 1.0, %v1262
    %v1264 = vtanh.pop %v1250
    %v1265 = vxor.u32 %v1251, 2147483648
    %v1266 = vmul.f32 %v1265, 1.442695
    %v1267 = vpow.pop %v1266
    %v1268 = vadd.f32 %v1267, 1.0
    %v1269 = vrcp.pop %v1268
    %v1270 = vmul.f32 1.0, %v1269
    %v1272 = vrot.slane %v1143, 6
    %v1274 = vmul.f32 %v1263, %v1272
    %v1275 = vmul.f32 %v1257, %v1264
    %v1276 = vadd.f32 %v1274, %v1275
    %v1277 = vtanh.pop %v1276
    %v1278 = vmul.f32 %v1270, %v1277
    %v1279 = vld [vmem:[#allocation2 + $0x20] sm:$0xc0]
    %v1280 = vld [vmem:[#allocation2 + $0x28] sm:$0xc0]
    %v1281 = vld [vmem:[#allocation2 + $0x30] sm:$0xc0]
    %v1282 = vld [vmem:[#allocation2 + $0x38] sm:$0xc0]
    %v1283 = vpack.c.bf16 %v1278, %v1278
    %v1285 = vrot.slane %v1283, 2
    %1287 = vmatprep.subr.bf16.mxu0 %v354
    %1288 = vmatpush1.bf16.msra.mxu0 %v353
    %1289 = vmatprep.subr.bf16.mxu0 %v350
    %1290 = vmatpush1.bf16.msra.mxu0 %v349
    %1291 = vmatprep.subr.bf16.mxu0 %v346
    %1292 = vmatpush1.bf16.msra.mxu0 %v345
    %1293 = vmatprep.subr.bf16.mxu0 %v342
    %1294 = vmatpush1.bf16.msra.mxu0 %v341
    %1295 = vmatprep.subr.bf16.mxu0 %v338
    %1296 = vmatpush1.bf16.msra.mxu0 %v337
    %1297 = vmatprep.subr.bf16.mxu0 %v334
    %1298 = vmatpush1.bf16.msra.mxu0 %v333
    %1299 = vmatprep.subr.bf16.mxu0 %v330
    %1300 = vmatpush1.bf16.msra.mxu0 %v329
    %1301 = vmatprep.subr.bf16.mxu0 %v326
    %1302 = vmatpush1.bf16.msra.mxu0 %v325
    %1303 = vmatprep.subr.bf16.mxu0 0
    %1304 = vmatpush2.bf16.msra.mxu0 0
    %1305 = vmatprep.subr.bf16.mxu0 0
    %1306 = vmatpush2.bf16.msra.mxu0 0
    %1307 = vmatprep.subr.bf16.mxu0 0
    %1308 = vmatpush2.bf16.msra.mxu0 0
    %1309 = vmatprep.subr.bf16.mxu0 0
    %1310 = vmatpush2.bf16.msra.mxu0 0
    %1311 = vmatprep.subr.bf16.mxu0 0
    %1312 = vmatpush2.bf16.msra.mxu0 0
    %1313 = vmatprep.subr.bf16.mxu0 0
    %1314 = vmatpush2.bf16.msra.mxu0 0
    %1315 = vmatprep.subr.bf16.mxu0 0
    %1316 = vmatpush2.bf16.msra.mxu0 0
    %1317 = vmatprep.subr.bf16.mxu0 0
    %1318 = vmatpush2.bf16.msra.mxu0 0
    %1319 = vmatprep.mubr.bf16.mxu0 0
    %1320 = vmatmul.mubr.bf16.gmra.mxu0 %v1285
    %v1321 = vpop.f32.mrf.mxu0
    %v1322 = vadd.f32 0.0, %v1321
    %v1323 = vpop.f32.mrf.mxu0
    %v1324 = vadd.f32 0.0, %v1323
    %v1325 = vpop.f32.mrf.mxu0
    %v1326 = vpop.f32.mrf.mxu0
    %1327 = vdwg.mxu0
    %1328 = vmatprep.subr.bf16.mxu0 %v356
    %1329 = vmatpush1.bf16.msra.mxu0 %v355
    %1330 = vmatprep.subr.bf16.mxu0 %v352
    %1331 = vmatpush1.bf16.msra.mxu0 %v351
    %1332 = vmatprep.subr.bf16.mxu0 %v348
    %1333 = vmatpush1.bf16.msra.mxu0 %v347
    %1334 = vmatprep.subr.bf16.mxu0 %v344
    %1335 = vmatpush1.bf16.msra.mxu0 %v343
    %1336 = vmatprep.subr.bf16.mxu0 %v340
    %1337 = vmatpush1.bf16.msra.mxu0 %v339
    %1338 = vmatprep.subr.bf16.mxu0 %v336
    %1339 = vmatpush1.bf16.msra.mxu0 %v335
    %1340 = vmatprep.subr.bf16.mxu0 %v332
    %1341 = vmatpush1.bf16.msra.mxu0 %v331
    %1342 = vmatprep.subr.bf16.mxu0 %v328
    %1343 = vmatpush1.bf16.msra.mxu0 %v327
    %1344 = vmatprep.subr.bf16.mxu0 0
    %1345 = vmatpush2.bf16.msra.mxu0 0
    %1346 = vmatprep.subr.bf16.mxu0 0
    %1347 = vmatpush2.bf16.msra.mxu0 0
    %1348 = vmatprep.subr.bf16.mxu0 0
    %1349 = vmatpush2.bf16.msra.mxu0 0
    %1350 = vmatprep.subr.bf16.mxu0 0
    %1351 = vmatpush2.bf16.msra.mxu0 0
    %1352 = vmatprep.subr.bf16.mxu0 0
    %1353 = vmatpush2.bf16.msra.mxu0 0
    %1354 = vmatprep.subr.bf16.mxu0 0
    %1355 = vmatpush2.bf16.msra.mxu0 0
    %1356 = vmatprep.subr.bf16.mxu0 0
    %1357 = vmatpush2.bf16.msra.mxu0 0
    %1358 = vmatprep.subr.bf16.mxu0 0
    %1359 = vmatpush2.bf16.msra.mxu0 0
    %1360 = vmatprep.mubr.bf16.mxu0 0
    %1361 = vmatmul.mubr.bf16.gmra.mxu0 %v1285
    %v1362 = vpop.f32.mrf.mxu0
    %v1363 = vadd.f32 0.0, %v1362
    %v1364 = vpop.f32.mrf.mxu0
    %v1365 = vadd.f32 0.0, %v1364
    %v1366 = vpop.f32.mrf.mxu0
    %v1367 = vpop.f32.mrf.mxu0
    %1368 = vdwg.mxu0
    %v1373 = vrot.slane %v1322, 2
    %v1374 = vrot.slane %v1324, 2
    %v1375 = vrot.slane %v1363, 2
    %v1376 = vrot.slane %v1365, 2
    %v1381 = vadd.f32 %v1279, %v1373
    %v1382 = vadd.f32 %v1280, %v1374
    %v1383 = vadd.f32 %v1281, %v1375
    %v1384 = vadd.f32 %v1282, %v1376
    %v1385 = vxor.u32 %v1381, 2147483648
    %v1386 = vmul.f32 %v1385, 1.442695
    %v1387 = vpow.pop %v1386
    %v1388 = vadd.f32 %v1387, 1.0
    %v1389 = vrcp.pop %v1388
    %v1390 = vmul.f32 1.0, %v1389
    %v1391 = vxor.u32 %v1382, 2147483648
    %v1392 = vmul.f32 %v1391, 1.442695
    %v1393 = vpow.pop %v1392
    %v1394 = vadd.f32 %v1393, 1.0
    %v1395 = vrcp.pop %v1394
    %v1396 = vmul.f32 1.0, %v1395
    %v1397 = vtanh.pop %v1383
    %v1398 = vxor.u32 %v1384, 2147483648
    %v1399 = vmul.f32 %v1398, 1.442695
    %v1400 = vpow.pop %v1399
    %v1401 = vadd.f32 %v1400, 1.0
    %v1402 = vrcp.pop %v1401
    %v1403 = vmul.f32 1.0, %v1402
    %v1405 = vrot.slane %v1276, 6
    %v1407 = vmul.f32 %v1396, %v1405
    %v1408 = vmul.f32 %v1390, %v1397
    %v1409 = vadd.f32 %v1407, %v1408
    %v1410 = vtanh.pop %v1409
    %v1411 = vmul.f32 %v1403, %v1410
    %v1412 = vld [vmem:[%s0 + $0x4] sm:$0x8]
    %v1413 = vld [vmem:[%s4] sm:$0xff]
    %v1414 = vld [vmem:[%s5] sm:$0xf]
    %v1416 = vlaneseq
    %v1417 = vshrl.u32 %v1416, 7
    %v1418 = vsub.s32 0, %v1417
    %v1419 = vrot.slane %v1414, %v1418
    %v1420 = vlaneseq
    %v1421 = vshrl.u32 %v1420, 7
    %v1422 = vsub.s32 2, %v1421
    %v1423 = vrot.slane %v1414, %v1422
    %v1424 = vlaneseq
    %v1425 = vshrl.u32 %v1424, 7
    %v1426 = vsub.s32 3, %v1425
    %v1427 = vrot.slane %v1414, %v1426
    %v1432 = vunpack.c.l.b16 %v1412
    %v1433 = vpack.c.b16 %v1432, %v1432
    %v1434 = vrot.slane %v1433, 3
    %v1436 = vcombine.high %v1413, %v1413
    %v1438 = vunpack.c.l.s4 1983009808
    %v1439 = vunpack.c.0.s8 %v1438
    %v1440 = vlaneseq
    %v1441 = vshrl.u32 %v1440, 7
    %v1442 = vsub.s32 %v1439, %v1441
    %v1443 = vrot.slane %v1413, %v1442
    %v1445 = vunpack.c.l.s4 1983009808
    %v1446 = vunpack.c.0.s8 %v1445
    %v1447 = vlaneseq
    %v1448 = vshrl.u32 %v1447, 7
    %v1449 = vsub.s32 %v1446, %v1448
    %v1450 = vrot.slane %v1436, %v1449
    %v1451 = vcombine.high %v1443, %v1443
    %v1452 = vcombine.high %v1450, %v1450
    %v1454 = vsel %vm82, %v1434, 0
    %v1457 = vsel %vm86, %v1443, 0
    %v1460 = vsel %vm86, %v1451, 0
    %v1463 = vsel %vm86, %v1450, 0
    %v1466 = vsel %vm86, %v1452, 0
    %1468 = vmatprep.subr.bf16.mxu0 0
    %1469 = vmatpush1.bf16.msra.mxu0 0
    %1470 = vmatprep.subr.bf16.mxu0 0
    %1471 = vmatpush1.bf16.msra.mxu0 0
    %1472 = vmatprep.subr.bf16.mxu0 0
    %1473 = vmatpush1.bf16.msra.mxu0 0
    %1474 = vmatprep.subr.bf16.mxu0 0
    %1475 = vmatpush1.bf16.msra.mxu0 0
    %1476 = vmatprep.subr.bf16.mxu0 0
    %1477 = vmatpush1.bf16.msra.mxu0 0
    %1478 = vmatprep.subr.bf16.mxu0 0
    %1479 = vmatpush1.bf16.msra.mxu0 0
    %1480 = vmatprep.subr.bf16.mxu0 0
    %1481 = vmatpush1.bf16.msra.mxu0 0
    %1482 = vmatprep.subr.bf16.mxu0 %v1460
    %1483 = vmatpush1.bf16.msra.mxu0 %v1457
    %1484 = vmatprep.subr.bf16.mxu0 0
    %1485 = vmatpush2.bf16.msra.mxu0 0
    %1486 = vmatprep.subr.bf16.mxu0 0
    %1487 = vmatpush2.bf16.msra.mxu0 0
    %1488 = vmatprep.subr.bf16.mxu0 0
    %1489 = vmatpush2.bf16.msra.mxu0 0
    %1490 = vmatprep.subr.bf16.mxu0 0
    %1491 = vmatpush2.bf16.msra.mxu0 0
    %1492 = vmatprep.subr.bf16.mxu0 0
    %1493 = vmatpush2.bf16.msra.mxu0 0
    %1494 = vmatprep.subr.bf16.mxu0 0
    %1495 = vmatpush2.bf16.msra.mxu0 0
    %1496 = vmatprep.subr.bf16.mxu0 0
    %1497 = vmatpush2.bf16.msra.mxu0 0
    %1498 = vmatprep.subr.bf16.mxu0 0
    %1499 = vmatpush2.bf16.msra.mxu0 0
    %1500 = vmatprep.mubr.bf16.mxu0 0
    %1501 = vmatmul.mubr.bf16.gmra.mxu0 %v1454
    %v1502 = vpop.f32.mrf.mxu0
    %v1503 = vadd.f32 %v1419, %v1502
    %v1504 = vpop.f32.mrf.mxu0
    %v1505 = vpop.f32.mrf.mxu0
    %v1506 = vpop.f32.mrf.mxu0
    %1507 = vdwg.mxu0
    %1508 = vmatprep.subr.bf16.mxu0 0
    %1509 = vmatpush1.bf16.msra.mxu0 0
    %1510 = vmatprep.subr.bf16.mxu0 0
    %1511 = vmatpush1.bf16.msra.mxu0 0
    %1512 = vmatprep.subr.bf16.mxu0 0
    %1513 = vmatpush1.bf16.msra.mxu0 0
    %1514 = vmatprep.subr.bf16.mxu0 0
    %1515 = vmatpush1.bf16.msra.mxu0 0
    %1516 = vmatprep.subr.bf16.mxu0 0
    %1517 = vmatpush1.bf16.msra.mxu0 0
    %1518 = vmatprep.subr.bf16.mxu0 0
    %1519 = vmatpush1.bf16.msra.mxu0 0
    %1520 = vmatprep.subr.bf16.mxu0 0
    %1521 = vmatpush1.bf16.msra.mxu0 0
    %1522 = vmatprep.subr.bf16.mxu0 %v1466
    %1523 = vmatpush1.bf16.msra.mxu0 %v1463
    %1524 = vmatprep.subr.bf16.mxu0 0
    %1525 = vmatpush2.bf16.msra.mxu0 0
    %1526 = vmatprep.subr.bf16.mxu0 0
    %1527 = vmatpush2.bf16.msra.mxu0 0
    %1528 = vmatprep.subr.bf16.mxu0 0
    %1529 = vmatpush2.bf16.msra.mxu0 0
    %1530 = vmatprep.subr.bf16.mxu0 0
    %1531 = vmatpush2.bf16.msra.mxu0 0
    %1532 = vmatprep.subr.bf16.mxu0 0
    %1533 = vmatpush2.bf16.msra.mxu0 0
    %1534 = vmatprep.subr.bf16.mxu0 0
    %1535 = vmatpush2.bf16.msra.mxu0 0
    %1536 = vmatprep.subr.bf16.mxu0 0
    %1537 = vmatpush2.bf16.msra.mxu0 0
    %1538 = vmatprep.subr.bf16.mxu0 0
    %1539 = vmatpush2.bf16.msra.mxu0 0
    %1540 = vmatprep.mubr.bf16.mxu0 0
    %1541 = vmatmul.mubr.bf16.gmra.mxu0 %v1454
    %v1542 = vpop.f32.mrf.mxu0
    %v1543 = vadd.f32 %v1423, %v1542
    %v1544 = vpop.f32.mrf.mxu0
    %v1545 = vadd.f32 %v1427, %v1544
    %v1546 = vpop.f32.mrf.mxu0
    %v1547 = vpop.f32.mrf.mxu0
    %1548 = vdwg.mxu0
    %v1549 = vxor.u32 %v1503, 2147483648
    %v1550 = vmul.f32 %v1549, 1.442695
    %v1551 = vpow.pop %v1550
    %v1552 = vadd.f32 %v1551, 1.0
    %v1553 = vrcp.pop %v1552
    %v1554 = vmul.f32 1.0, %v1553
    %v1555 = vtanh.pop %v1543
    %v1556 = vxor.u32 %v1545, 2147483648
    %v1557 = vmul.f32 %v1556, 1.442695
    %v1558 = vpow.pop %v1557
    %v1559 = vadd.f32 %v1558, 1.0
    %v1560 = vrcp.pop %v1559
    %v1561 = vmul.f32 1.0, %v1560
    %v1562 = vmul.f32 %v1554, %v1555
    %v1563 = vtanh.pop %v1562
    %v1564 = vmul.f32 %v1561, %v1563
    %v1565 = vpack.c.bf16 %v1411, %v1411
    %v1566 = vld [vmem:[%s6] sm:$0xf]
    %v1567 = vld [vmem:[%s6 + $0x4] sm:$0xf]
    %v1568 = vld [vmem:[%s6 + $0x8] sm:$0xf]
    %v1569 = vld [vmem:[%s6 + $0xc] sm:$0xf]
    %v1570 = vld [vmem:[%s6 + $0x10] sm:$0xf]
    %v1571 = vld [vmem:[%s6 + $0x14] sm:$0xf]
    %v1572 = vld [vmem:[%s6 + $0x18] sm:$0xf]
    %v1573 = vld [vmem:[%s6 + $0x1c] sm:$0xf]
    %v1574 = vld [vmem:[%s6 + $0x20] sm:$0xf]
    %v1575 = vld [vmem:[%s6 + $0x24] sm:$0xf]
    %v1576 = vld [vmem:[%s6 + $0x28] sm:$0xf]
    %v1577 = vld [vmem:[%s6 + $0x2c] sm:$0xf]
    %v1578 = vld [vmem:[%s6 + $0x30] sm:$0xf]
    %v1579 = vld [vmem:[%s6 + $0x34] sm:$0xf]
    %v1580 = vld [vmem:[%s6 + $0x38] sm:$0xf]
    %v1581 = vld [vmem:[%s6 + $0x3c] sm:$0xf]
    %v1582 = vpack.c.bf16 %v1564, %v1564
    %v1583 = vld [vmem:[%s7] sm:$0xf]
    %v1584 = vld [vmem:[%s7 + $0x4] sm:$0xf]
    %v1585 = vld [vmem:[%s7 + $0x8] sm:$0xf]
    %v1586 = vld [vmem:[%s7 + $0xc] sm:$0xf]
    %v1587 = vld [vmem:[%s7 + $0x10] sm:$0xf]
    %v1588 = vld [vmem:[%s7 + $0x14] sm:$0xf]
    %v1589 = vld [vmem:[%s7 + $0x18] sm:$0xf]
    %v1590 = vld [vmem:[%s7 + $0x1c] sm:$0xf]
    %v1591 = vld [vmem:[%s7 + $0x20] sm:$0xf]
    %v1592 = vld [vmem:[%s7 + $0x24] sm:$0xf]
    %v1593 = vld [vmem:[%s7 + $0x28] sm:$0xf]
    %v1594 = vld [vmem:[%s7 + $0x2c] sm:$0xf]
    %v1595 = vld [vmem:[%s7 + $0x30] sm:$0xf]
    %v1596 = vld [vmem:[%s7 + $0x34] sm:$0xf]
    %v1597 = vld [vmem:[%s7 + $0x38] sm:$0xf]
    %v1598 = vld [vmem:[%s7 + $0x3c] sm:$0xf]
    %v1615 = vunpack.c.l.b16 %v1583
    %v1616 = vunpack.c.l.b16 %v1584
    %v1617 = vunpack.c.l.b16 %v1585
    %v1618 = vunpack.c.l.b16 %v1586
    %v1619 = vunpack.c.l.b16 %v1587
    %v1620 = vunpack.c.l.b16 %v1588
    %v1621 = vunpack.c.l.b16 %v1589
    %v1622 = vunpack.c.l.b16 %v1590
    %v1623 = vunpack.c.l.b16 %v1591
    %v1624 = vunpack.c.l.b16 %v1592
    %v1625 = vunpack.c.l.b16 %v1593
    %v1626 = vunpack.c.l.b16 %v1594
    %v1627 = vunpack.c.l.b16 %v1595
    %v1628 = vunpack.c.l.b16 %v1596
    %v1629 = vunpack.c.l.b16 %v1597
    %v1630 = vunpack.c.l.b16 %v1598
    %v1631 = vpack.c.b16 %v1616, %v1615
    %v1632 = vpack.c.b16 %v1618, %v1617
    %v1633 = vpack.c.b16 %v1620, %v1619
    %v1634 = vpack.c.b16 %v1622, %v1621
    %v1635 = vpack.c.b16 %v1624, %v1623
    %v1636 = vpack.c.b16 %v1626, %v1625
    %v1637 = vpack.c.b16 %v1628, %v1627
    %v1638 = vpack.c.b16 %v1630, %v1629
    %1647 = vmatprep.subr.bf16.mxu0 0
    %1648 = vmatpush1.bf16.msra.mxu0 %v1638
    %1649 = vmatprep.subr.bf16.mxu0 0
    %1650 = vmatpush1.bf16.msra.mxu0 %v1637
    %1651 = vmatprep.subr.bf16.mxu0 0
    %1652 = vmatpush1.bf16.msra.mxu0 %v1636
    %1653 = vmatprep.subr.bf16.mxu0 0
    %1654 = vmatpush1.bf16.msra.mxu0 %v1635
    %1655 = vmatprep.subr.bf16.mxu0 0
    %1656 = vmatpush1.bf16.msra.mxu0 %v1634
    %1657 = vmatprep.subr.bf16.mxu0 0
    %1658 = vmatpush1.bf16.msra.mxu0 %v1633
    %1659 = vmatprep.subr.bf16.mxu0 0
    %1660 = vmatpush1.bf16.msra.mxu0 %v1632
    %1661 = vmatprep.subr.bf16.mxu0 0
    %1662 = vmatpush1.bf16.msra.mxu0 %v1631
    %1663 = vmatprep.subr.bf16.mxu0 0
    %1664 = vmatpush2.bf16.msra.mxu0 0
    %1665 = vmatprep.subr.bf16.mxu0 0
    %1666 = vmatpush2.bf16.msra.mxu0 0
    %1667 = vmatprep.subr.bf16.mxu0 0
    %1668 = vmatpush2.bf16.msra.mxu0 0
    %1669 = vmatprep.subr.bf16.mxu0 0
    %1670 = vmatpush2.bf16.msra.mxu0 0
    %1671 = vmatprep.subr.bf16.mxu0 0
    %1672 = vmatpush2.bf16.msra.mxu0 0
    %1673 = vmatprep.subr.bf16.mxu0 0
    %1674 = vmatpush2.bf16.msra.mxu0 0
    %1675 = vmatprep.subr.bf16.mxu0 0
    %1676 = vmatpush2.bf16.msra.mxu0 0
    %1677 = vmatprep.subr.bf16.mxu0 0
    %1678 = vmatpush2.bf16.msra.mxu0 0
    %1679 = vmatprep.mubr.bf16.mxu0 0
    %1680 = vmatmul.mubr.bf16.gmra.mxu0 %v1582
    %v1681 = vpop.f32.mrf.mxu0
    %v1682 = vadd.f32 0.0, %v1681
    %v1683 = vpop.f32.mrf.mxu0
    %v1684 = vpop.f32.mrf.mxu0
    %v1685 = vpop.f32.mrf.mxu0
    %1686 = vdwg.mxu0
    %v1688 = vrot.slane %v1565, 3
    %v1706 = vunpack.c.l.b16 %v1566
    %v1707 = vunpack.c.l.b16 %v1567
    %v1708 = vunpack.c.l.b16 %v1568
    %v1709 = vunpack.c.l.b16 %v1569
    %v1710 = vunpack.c.l.b16 %v1570
    %v1711 = vunpack.c.l.b16 %v1571
    %v1712 = vunpack.c.l.b16 %v1572
    %v1713 = vunpack.c.l.b16 %v1573
    %v1714 = vunpack.c.l.b16 %v1574
    %v1715 = vunpack.c.l.b16 %v1575
    %v1716 = vunpack.c.l.b16 %v1576
    %v1717 = vunpack.c.l.b16 %v1577
    %v1718 = vunpack.c.l.b16 %v1578
    %v1719 = vunpack.c.l.b16 %v1579
    %v1720 = vunpack.c.l.b16 %v1580
    %v1721 = vunpack.c.l.b16 %v1581
    %v1722 = vpack.c.b16 %v1707, %v1706
    %v1723 = vpack.c.b16 %v1709, %v1708
    %v1724 = vpack.c.b16 %v1711, %v1710
    %v1725 = vpack.c.b16 %v1713, %v1712
    %v1726 = vpack.c.b16 %v1715, %v1714
    %v1727 = vpack.c.b16 %v1717, %v1716
    %v1728 = vpack.c.b16 %v1719, %v1718
    %v1729 = vpack.c.b16 %v1721, %v1720
    %1738 = vmatprep.subr.bf16.mxu0 0
    %1739 = vmatpush1.bf16.msra.mxu0 %v1729
    %1740 = vmatprep.subr.bf16.mxu0 0
    %1741 = vmatpush1.bf16.msra.mxu0 %v1728
    %1742 = vmatprep.subr.bf16.mxu0 0
    %1743 = vmatpush1.bf16.msra.mxu0 %v1727
    %1744 = vmatprep.subr.bf16.mxu0 0
    %1745 = vmatpush1.bf16.msra.mxu0 %v1726
    %1746 = vmatprep.subr.bf16.mxu0 0
    %1747 = vmatpush1.bf16.msra.mxu0 %v1725
    %1748 = vmatprep.subr.bf16.mxu0 0
    %1749 = vmatpush1.bf16.msra.mxu0 %v1724
    %1750 = vmatprep.subr.bf16.mxu0 0
    %1751 = vmatpush1.bf16.msra.mxu0 %v1723
    %1752 = vmatprep.subr.bf16.mxu0 0
    %1753 = vmatpush1.bf16.msra.mxu0 %v1722
    %1754 = vmatprep.subr.bf16.mxu0 0
    %1755 = vmatpush2.bf16.msra.mxu0 0
    %1756 = vmatprep.subr.bf16.mxu0 0
    %1757 = vmatpush2.bf16.msra.mxu0 0
    %1758 = vmatprep.subr.bf16.mxu0 0
    %1759 = vmatpush2.bf16.msra.mxu0 0
    %1760 = vmatprep.subr.bf16.mxu0 0
    %1761 = vmatpush2.bf16.msra.mxu0 0
    %1762 = vmatprep.subr.bf16.mxu0 0
    %1763 = vmatpush2.bf16.msra.mxu0 0
    %1764 = vmatprep.subr.bf16.mxu0 0
    %1765 = vmatpush2.bf16.msra.mxu0 0
    %1766 = vmatprep.subr.bf16.mxu0 0
    %1767 = vmatpush2.bf16.msra.mxu0 0
    %1768 = vmatprep.subr.bf16.mxu0 0
    %1769 = vmatpush2.bf16.msra.mxu0 0
    %1770 = vmatprep.mubr.bf16.mxu0 0
    %1771 = vmatmul.mubr.bf16.gmra.mxu0 %v1688
    %v1772 = vpop.f32.mrf.mxu0
    %v1773 = vadd.f32 %v1682, %v1772
    %v1774 = vpop.f32.mrf.mxu0
    %v1775 = vpop.f32.mrf.mxu0
    %v1776 = vpop.f32.mrf.mxu0
    %1777 = vdwg.mxu0
    %v1778 = vld [vmem:[%s8] sm:$0x1]
    %v1780 = vlaneseq
    %v1781 = vshrl.u32 %v1780, 7
    %v1782 = vsub.s32 0, %v1781
    %v1783 = vrot.slane %v1778, %v1782
    %v1785 = vadd.f32 %v1773, %v1783
    %v1786 = vsel %vm86, %v1785, -inf
    %1787 = vmax.xlane.f32.xlu0 %v1786
    %v1788 = vpop.xlane.xlu0 %1787
    %v1789 = vsub.f32 %v1785, %v1788
    %v1790 = vmul.f32 %v1789, 1.442695
    %v1791 = vpow.pop %v1790
    %v1792 = vsel %vm86, %v1791, 0.0
    %1793 = vadd.xlane.f32.xlu0 %v1792
    %v1794 = vpop.xlane.xlu0 %1793
    %v1795 = vrcp.pop %v1794
    %v1796 = vmul.f32 %v1794, %v1795
    %v1797 = vsub.f32 2.0, %v1796
    %v1798 = vmul.f32 %v1795, %v1797
    %v1799 = vmul.f32 %v1794, %v1798
    %v1800 = vsub.f32 2.0, %v1799
    %v1801 = vmul.f32 %v1798, %v1800
    %v1802 = vmul.f32 %v1791, %v1801
    %1803 = vst [vmem:[#allocation3] sm:$0x3] %v1802
    // Predicated region
    $region38: #{bilstm_model_forward.1} parent=1 // pred_check
      _
    $region39: #{bilstm_model_forward.1} parent=1 // pred_check_branch
      %1805 = sbr.rel (0) target = $region41
    $region40: #{bilstm_model_forward.1} parent=1 // pred_region
      %s1807 = ssub.s32 32, 32
      %1808 = vsyncadd [#allocation4], %s1807
      %s1810 = sshll.u32 [#allocation3], 4
      %s1811 = int_to_ptr.vmem [resolvable:$true] %s1810
      %1813 = dma.vmem_to_hbm [thread:$0]  %s1811, 32, %s9, [#allocation4]
    $region41: #{bilstm_model_forward.1} parent=1 // pred_fallthru
      _
    // Predicated region
    $region42: #{bilstm_model_forward.1} parent=1 // pred_check
      _
    $region43: #{bilstm_model_forward.1} parent=1 // pred_check_branch
      %1815 = sbr.rel (0) target = $region45
    $region44: #{bilstm_model_forward.1} parent=1 // pred_region
      %1816 = dma.done [#allocation4], 32
    $region45: #{bilstm_model_forward.1} parent=1 // pred_fallthru
      _
    %1817 = vsyncpa [#allocation4], 1

</llo_original>
